<compile_context>
chip_gen: v5e
topology: v5e:2x2
jax: 0.10.0
libtpu: 0.0.40
codegen_flags: <defaults>
</compile_context>

<pallas_src>
import jax
import jax.numpy as jnp
from jax.experimental import pallas as pl
from jax.experimental.pallas import tpu as pltpu


def mf_forward_kernel(b_sm, s_sm, u_hbm, v_hbm, o_ref, u_buf, v_buf, sems):
    """One grid step == one batch row.

    b_sm, s_sm : (B, L) int32 scalar-prefetch index tables (SMEM).
    u_hbm      : (n_users, F) float32 user table, left in HBM (pl.ANY).
    v_hbm      : (n_items, F) float32 item table, left in HBM (pl.ANY).
    o_ref      : (1, 1, 128) float32 output block (score broadcast over lanes).
    u_buf/v_buf: (L, F) float32 VMEM gather buffers.
    sems       : (2, L) DMA semaphores.
    """
    i = pl.program_id(0)
    L = u_buf.shape[0]
    n_users = u_hbm.shape[0]
    n_items = v_hbm.shape[0]

    # Issue all 2*L index-driven row-gather DMAs (HBM -> VMEM), then wait.
    copies = []
    for j in range(L):  # L is small and static: unrolled, DMAs overlap.
        b_idx = jnp.clip(b_sm[i, j], 0, n_users - 1)
        s_idx = jnp.clip(s_sm[i, j], 0, n_items - 1)
        cu = pltpu.make_async_copy(u_hbm.at[pl.ds(b_idx, 1), :],
                                   u_buf.at[pl.ds(j, 1), :],
                                   sems.at[0, j])
        cv = pltpu.make_async_copy(v_hbm.at[pl.ds(s_idx, 1), :],
                                   v_buf.at[pl.ds(j, 1), :],
                                   sems.at[1, j])
        cu.start()
        cv.start()
        copies.append(cu)
        copies.append(cv)
    for c in copies:
        c.wait()

    # (L, F) elementwise product, reduce over factors (lanes) and the
    # sequence positions (sublanes) -> (1, 1) score for this batch row.
    prod = u_buf[...] * v_buf[...]
    score = jnp.sum(jnp.sum(prod, axis=-1, keepdims=True), axis=0, keepdims=True)

    # Lane-dense store: broadcast the scalar across the 128-lane output slab.
    o_ref[...] = jnp.broadcast_to(score.reshape(1, 1, 1), (1, 1, 128))


def matrix_factorization_forward(b, s, user_emb, item_emb):
    """b, s: (batch, L) integer index matrices.  Returns (batch,) float32."""
    B, L = b.shape
    F = user_emb.shape[1]

    grid_spec = pltpu.PrefetchScalarGridSpec(
        num_scalar_prefetch=2,                 # b and s land in SMEM
        grid=(B,),
        in_specs=[
            pl.BlockSpec(memory_space=pl.ANY),  # user embedding table (HBM)
            pl.BlockSpec(memory_space=pl.ANY),  # item embedding table (HBM)
        ],
        out_specs=pl.BlockSpec((1, 1, 128), lambda i, b_pref, s_pref: (i, 0, 0)),
        scratch_shapes=[
            pltpu.VMEM((L, F), jnp.float32),    # gathered user rows
            pltpu.VMEM((L, F), jnp.float32),    # gathered item rows
            pltpu.SemaphoreType.DMA((2, L)),
        ],
    )

    out = pl.pallas_call(
        mf_forward_kernel,
        out_shape=jax.ShapeDtypeStruct((B, 1, 128), jnp.float32),
        grid_spec=grid_spec,
        compiler_params=pltpu.CompilerParams(
            dimension_semantics=("parallel",)),
    )(b.astype(jnp.int32), s.astype(jnp.int32),
      user_emb.astype(jnp.float32), item_emb.astype(jnp.float32))

    return out[:, 0, 0]


if __name__ == "__main__":
    # Module hyperparameters (small, consistent with the forward semantics).
    n_users, n_items, n_factors = 10, 12, 5
    batch, seq = 2, 8

    key = jax.random.PRNGKey(0)
    k_u, k_v, k_b, k_s = jax.random.split(key, 4)

    # nn.Embedding default init: N(0, 1).
    user_emb = jax.random.normal(k_u, (n_users, n_factors), dtype=jnp.float32)
    item_emb = jax.random.normal(k_v, (n_items, n_factors), dtype=jnp.float32)

    b = jax.random.randint(k_b, (batch, seq), 0, n_users, dtype=jnp.int32)
    s = jax.random.randint(k_s, (batch, seq), 0, n_items, dtype=jnp.int32)

    out = matrix_factorization_forward(b, s, user_emb, item_emb)
    out = jax.block_until_ready(out)

    # Pure-JAX reference: (U[b] * V[s]).sum(1).sum(1)
    ref = jnp.sum(user_emb[b] * item_emb[s], axis=(1, 2))
    assert out.shape == (batch,)
    assert jnp.allclose(out, ref, atol=1e-5, rtol=1e-5), (out, ref)

    print("KERNEL_OK")
</pallas_src>

<mosaic_0001>
module attributes {stable_mosaic.version = 11 : i64} {
  func.func @mf_forward_kernel(%arg0: i32, %arg1: memref<2x8xi32, #tpu.memory_space<smem>>, %arg2: memref<2x8xi32, #tpu.memory_space<smem>>, %arg3: memref<10x5xf32, #tpu.memory_space<any>>, %arg4: memref<12x5xf32, #tpu.memory_space<any>>, %arg5: memref<1x1x128xf32, #tpu.memory_space<vmem>>, %arg6: memref<8x5xf32, #tpu.memory_space<vmem>>, %arg7: memref<8x5xf32, #tpu.memory_space<vmem>>, %arg8: memref<2x8x!tpu.dma_semaphore, #tpu.memory_space<semaphore_mem>>) attributes {dimension_semantics = [#tpu.dimension_semantics<parallel>], iteration_bounds = array<i64: 2>, scalar_prefetch = 2 : i64, scratch_operands = 3 : i64, tpu.core_type = #tpu.core_type<tc>, window_params = [{}, {}, {transform_indices = @transform_2, window_bounds = array<i64: 1, 1, 128>}]} {
    %0 = arith.index_cast %arg0 : i32 to index
    %c0 = arith.constant 0 : index
    %1 = memref.load %arg1[%0, %c0] : memref<2x8xi32, #tpu.memory_space<smem>>
    %c0_i32 = arith.constant 0 : i32
    %c9_i32 = arith.constant 9 : i32
    %2 = arith.maxsi %c0_i32, %1 : i32
    %3 = arith.minsi %c9_i32, %2 : i32
    %4 = arith.index_cast %arg0 : i32 to index
    %c0_0 = arith.constant 0 : index
    %5 = memref.load %arg2[%4, %c0_0] : memref<2x8xi32, #tpu.memory_space<smem>>
    %c0_i32_1 = arith.constant 0 : i32
    %c11_i32 = arith.constant 11 : i32
    %6 = arith.maxsi %c0_i32_1, %5 : i32
    %7 = arith.minsi %c11_i32, %6 : i32
    %c0_i32_2 = arith.constant 0 : i32
    %c0_i32_3 = arith.constant 0 : i32
    %c0_i32_4 = arith.constant 0 : i32
    %8 = tpu.memref_slice %arg3[%3, %c0_i32_4] : memref<10x5xf32, #tpu.memory_space<any>> -> memref<1x5xf32, #tpu.memory_space<any>>
    %c0_i32_5 = arith.constant 0 : i32
    %c0_i32_6 = arith.constant 0 : i32
    %9 = tpu.memref_slice %arg6[%c0_i32_5, %c0_i32_6] : memref<8x5xf32, #tpu.memory_space<vmem>> -> memref<1x5xf32, #tpu.memory_space<vmem>>
    %10 = tpu.memref_slice %arg8[%c0_i32_2, %c0_i32_3] : memref<2x8x!tpu.dma_semaphore, #tpu.memory_space<semaphore_mem>> -> memref<1x1x!tpu.dma_semaphore, #tpu.memory_space<semaphore_mem>>
    %11 = tpu.memref_squeeze %10 : memref<1x1x!tpu.dma_semaphore, #tpu.memory_space<semaphore_mem>> -> memref<!tpu.dma_semaphore, #tpu.memory_space<semaphore_mem>>
    tpu.enqueue_dma source(%8 : memref<1x5xf32, #tpu.memory_space<any>>) target(%9 : memref<1x5xf32, #tpu.memory_space<vmem>>) target_semaphore(%11 : memref<!tpu.dma_semaphore, #tpu.memory_space<semaphore_mem>>)
    %c1_i32 = arith.constant 1 : i32
    %c0_i32_7 = arith.constant 0 : i32
    %c0_i32_8 = arith.constant 0 : i32
    %12 = tpu.memref_slice %arg4[%7, %c0_i32_8] : memref<12x5xf32, #tpu.memory_space<any>> -> memref<1x5xf32, #tpu.memory_space<any>>
    %c0_i32_9 = arith.constant 0 : i32
    %c0_i32_10 = arith.constant 0 : i32
    %13 = tpu.memref_slice %arg7[%c0_i32_9, %c0_i32_10] : memref<8x5xf32, #tpu.memory_space<vmem>> -> memref<1x5xf32, #tpu.memory_space<vmem>>
    %14 = tpu.memref_slice %arg8[%c1_i32, %c0_i32_7] : memref<2x8x!tpu.dma_semaphore, #tpu.memory_space<semaphore_mem>> -> memref<1x1x!tpu.dma_semaphore, #tpu.memory_space<semaphore_mem>>
    %15 = tpu.memref_squeeze %14 : memref<1x1x!tpu.dma_semaphore, #tpu.memory_space<semaphore_mem>> -> memref<!tpu.dma_semaphore, #tpu.memory_space<semaphore_mem>>
    tpu.enqueue_dma source(%12 : memref<1x5xf32, #tpu.memory_space<any>>) target(%13 : memref<1x5xf32, #tpu.memory_space<vmem>>) target_semaphore(%15 : memref<!tpu.dma_semaphore, #tpu.memory_space<semaphore_mem>>)
    %16 = arith.index_cast %arg0 : i32 to index
    %c1 = arith.constant 1 : index
    %17 = memref.load %arg1[%16, %c1] : memref<2x8xi32, #tpu.memory_space<smem>>
    %c0_i32_11 = arith.constant 0 : i32
    %c9_i32_12 = arith.constant 9 : i32
    %18 = arith.maxsi %c0_i32_11, %17 : i32
    %19 = arith.minsi %c9_i32_12, %18 : i32
    %20 = arith.index_cast %arg0 : i32 to index
    %c1_13 = arith.constant 1 : index
    %21 = memref.load %arg2[%20, %c1_13] : memref<2x8xi32, #tpu.memory_space<smem>>
    %c0_i32_14 = arith.constant 0 : i32
    %c11_i32_15 = arith.constant 11 : i32
    %22 = arith.maxsi %c0_i32_14, %21 : i32
    %23 = arith.minsi %c11_i32_15, %22 : i32
    %c0_i32_16 = arith.constant 0 : i32
    %c1_i32_17 = arith.constant 1 : i32
    %c0_i32_18 = arith.constant 0 : i32
    %24 = tpu.memref_slice %arg3[%19, %c0_i32_18] : memref<10x5xf32, #tpu.memory_space<any>> -> memref<1x5xf32, #tpu.memory_space<any>>
    %c1_i32_19 = arith.constant 1 : i32
    %c0_i32_20 = arith.constant 0 : i32
    %25 = tpu.memref_slice %arg6[%c1_i32_19, %c0_i32_20] : memref<8x5xf32, #tpu.memory_space<vmem>> -> memref<1x5xf32, #tpu.memory_space<vmem>>
    %26 = tpu.memref_slice %arg8[%c0_i32_16, %c1_i32_17] : memref<2x8x!tpu.dma_semaphore, #tpu.memory_space<semaphore_mem>> -> memref<1x1x!tpu.dma_semaphore, #tpu.memory_space<semaphore_mem>>
    %27 = tpu.memref_squeeze %26 : memref<1x1x!tpu.dma_semaphore, #tpu.memory_space<semaphore_mem>> -> memref<!tpu.dma_semaphore, #tpu.memory_space<semaphore_mem>>
    tpu.enqueue_dma source(%24 : memref<1x5xf32, #tpu.memory_space<any>>) target(%25 : memref<1x5xf32, #tpu.memory_space<vmem>>) target_semaphore(%27 : memref<!tpu.dma_semaphore, #tpu.memory_space<semaphore_mem>>)
    %c1_i32_21 = arith.constant 1 : i32
    %c1_i32_22 = arith.constant 1 : i32
    %c0_i32_23 = arith.constant 0 : i32
    %28 = tpu.memref_slice %arg4[%23, %c0_i32_23] : memref<12x5xf32, #tpu.memory_space<any>> -> memref<1x5xf32, #tpu.memory_space<any>>
    %c1_i32_24 = arith.constant 1 : i32
    %c0_i32_25 = arith.constant 0 : i32
    %29 = tpu.memref_slice %arg7[%c1_i32_24, %c0_i32_25] : memref<8x5xf32, #tpu.memory_space<vmem>> -> memref<1x5xf32, #tpu.memory_space<vmem>>
    %30 = tpu.memref_slice %arg8[%c1_i32_21, %c1_i32_22] : memref<2x8x!tpu.dma_semaphore, #tpu.memory_space<semaphore_mem>> -> memref<1x1x!tpu.dma_semaphore, #tpu.memory_space<semaphore_mem>>
    %31 = tpu.memref_squeeze %30 : memref<1x1x!tpu.dma_semaphore, #tpu.memory_space<semaphore_mem>> -> memref<!tpu.dma_semaphore, #tpu.memory_space<semaphore_mem>>
    tpu.enqueue_dma source(%28 : memref<1x5xf32, #tpu.memory_space<any>>) target(%29 : memref<1x5xf32, #tpu.memory_space<vmem>>) target_semaphore(%31 : memref<!tpu.dma_semaphore, #tpu.memory_space<semaphore_mem>>)
    %32 = arith.index_cast %arg0 : i32 to index
    %c2 = arith.constant 2 : index
    %33 = memref.load %arg1[%32, %c2] : memref<2x8xi32, #tpu.memory_space<smem>>
    %c0_i32_26 = arith.constant 0 : i32
    %c9_i32_27 = arith.constant 9 : i32
    %34 = arith.maxsi %c0_i32_26, %33 : i32
    %35 = arith.minsi %c9_i32_27, %34 : i32
    %36 = arith.index_cast %arg0 : i32 to index
    %c2_28 = arith.constant 2 : index
    %37 = memref.load %arg2[%36, %c2_28] : memref<2x8xi32, #tpu.memory_space<smem>>
    %c0_i32_29 = arith.constant 0 : i32
    %c11_i32_30 = arith.constant 11 : i32
    %38 = arith.maxsi %c0_i32_29, %37 : i32
    %39 = arith.minsi %c11_i32_30, %38 : i32
    %c0_i32_31 = arith.constant 0 : i32
    %c2_i32 = arith.constant 2 : i32
    %c0_i32_32 = arith.constant 0 : i32
    %40 = tpu.memref_slice %arg3[%35, %c0_i32_32] : memref<10x5xf32, #tpu.memory_space<any>> -> memref<1x5xf32, #tpu.memory_space<any>>
    %c2_i32_33 = arith.constant 2 : i32
    %c0_i32_34 = arith.constant 0 : i32
    %41 = tpu.memref_slice %arg6[%c2_i32_33, %c0_i32_34] : memref<8x5xf32, #tpu.memory_space<vmem>> -> memref<1x5xf32, #tpu.memory_space<vmem>>
    %42 = tpu.memref_slice %arg8[%c0_i32_31, %c2_i32] : memref<2x8x!tpu.dma_semaphore, #tpu.memory_space<semaphore_mem>> -> memref<1x1x!tpu.dma_semaphore, #tpu.memory_space<semaphore_mem>>
    %43 = tpu.memref_squeeze %42 : memref<1x1x!tpu.dma_semaphore, #tpu.memory_space<semaphore_mem>> -> memref<!tpu.dma_semaphore, #tpu.memory_space<semaphore_mem>>
    tpu.enqueue_dma source(%40 : memref<1x5xf32, #tpu.memory_space<any>>) target(%41 : memref<1x5xf32, #tpu.memory_space<vmem>>) target_semaphore(%43 : memref<!tpu.dma_semaphore, #tpu.memory_space<semaphore_mem>>)
    %c1_i32_35 = arith.constant 1 : i32
    %c2_i32_36 = arith.constant 2 : i32
    %c0_i32_37 = arith.constant 0 : i32
    %44 = tpu.memref_slice %arg4[%39, %c0_i32_37] : memref<12x5xf32, #tpu.memory_space<any>> -> memref<1x5xf32, #tpu.memory_space<any>>
    %c2_i32_38 = arith.constant 2 : i32
    %c0_i32_39 = arith.constant 0 : i32
    %45 = tpu.memref_slice %arg7[%c2_i32_38, %c0_i32_39] : memref<8x5xf32, #tpu.memory_space<vmem>> -> memref<1x5xf32, #tpu.memory_space<vmem>>
    %46 = tpu.memref_slice %arg8[%c1_i32_35, %c2_i32_36] : memref<2x8x!tpu.dma_semaphore, #tpu.memory_space<semaphore_mem>> -> memref<1x1x!tpu.dma_semaphore, #tpu.memory_space<semaphore_mem>>
    %47 = tpu.memref_squeeze %46 : memref<1x1x!tpu.dma_semaphore, #tpu.memory_space<semaphore_mem>> -> memref<!tpu.dma_semaphore, #tpu.memory_space<semaphore_mem>>
    tpu.enqueue_dma source(%44 : memref<1x5xf32, #tpu.memory_space<any>>) target(%45 : memref<1x5xf32, #tpu.memory_space<vmem>>) target_semaphore(%47 : memref<!tpu.dma_semaphore, #tpu.memory_space<semaphore_mem>>)
    %48 = arith.index_cast %arg0 : i32 to index
    %c3 = arith.constant 3 : index
    %49 = memref.load %arg1[%48, %c3] : memref<2x8xi32, #tpu.memory_space<smem>>
    %c0_i32_40 = arith.constant 0 : i32
    %c9_i32_41 = arith.constant 9 : i32
    %50 = arith.maxsi %c0_i32_40, %49 : i32
    %51 = arith.minsi %c9_i32_41, %50 : i32
    %52 = arith.index_cast %arg0 : i32 to index
    %c3_42 = arith.constant 3 : index
    %53 = memref.load %arg2[%52, %c3_42] : memref<2x8xi32, #tpu.memory_space<smem>>
    %c0_i32_43 = arith.constant 0 : i32
    %c11_i32_44 = arith.constant 11 : i32
    %54 = arith.maxsi %c0_i32_43, %53 : i32
    %55 = arith.minsi %c11_i32_44, %54 : i32
    %c0_i32_45 = arith.constant 0 : i32
    %c3_i32 = arith.constant 3 : i32
    %c0_i32_46 = arith.constant 0 : i32
    %56 = tpu.memref_slice %arg3[%51, %c0_i32_46] : memref<10x5xf32, #tpu.memory_space<any>> -> memref<1x5xf32, #tpu.memory_space<any>>
    %c3_i32_47 = arith.constant 3 : i32
    %c0_i32_48 = arith.constant 0 : i32
    %57 = tpu.memref_slice %arg6[%c3_i32_47, %c0_i32_48] : memref<8x5xf32, #tpu.memory_space<vmem>> -> memref<1x5xf32, #tpu.memory_space<vmem>>
    %58 = tpu.memref_slice %arg8[%c0_i32_45, %c3_i32] : memref<2x8x!tpu.dma_semaphore, #tpu.memory_space<semaphore_mem>> -> memref<1x1x!tpu.dma_semaphore, #tpu.memory_space<semaphore_mem>>
    %59 = tpu.memref_squeeze %58 : memref<1x1x!tpu.dma_semaphore, #tpu.memory_space<semaphore_mem>> -> memref<!tpu.dma_semaphore, #tpu.memory_space<semaphore_mem>>
    tpu.enqueue_dma source(%56 : memref<1x5xf32, #tpu.memory_space<any>>) target(%57 : memref<1x5xf32, #tpu.memory_space<vmem>>) target_semaphore(%59 : memref<!tpu.dma_semaphore, #tpu.memory_space<semaphore_mem>>)
    %c1_i32_49 = arith.constant 1 : i32
    %c3_i32_50 = arith.constant 3 : i32
    %c0_i32_51 = arith.constant 0 : i32
    %60 = tpu.memref_slice %arg4[%55, %c0_i32_51] : memref<12x5xf32, #tpu.memory_space<any>> -> memref<1x5xf32, #tpu.memory_space<any>>
    %c3_i32_52 = arith.constant 3 : i32
    %c0_i32_53 = arith.constant 0 : i32
    %61 = tpu.memref_slice %arg7[%c3_i32_52, %c0_i32_53] : memref<8x5xf32, #tpu.memory_space<vmem>> -> memref<1x5xf32, #tpu.memory_space<vmem>>
    %62 = tpu.memref_slice %arg8[%c1_i32_49, %c3_i32_50] : memref<2x8x!tpu.dma_semaphore, #tpu.memory_space<semaphore_mem>> -> memref<1x1x!tpu.dma_semaphore, #tpu.memory_space<semaphore_mem>>
    %63 = tpu.memref_squeeze %62 : memref<1x1x!tpu.dma_semaphore, #tpu.memory_space<semaphore_mem>> -> memref<!tpu.dma_semaphore, #tpu.memory_space<semaphore_mem>>
    tpu.enqueue_dma source(%60 : memref<1x5xf32, #tpu.memory_space<any>>) target(%61 : memref<1x5xf32, #tpu.memory_space<vmem>>) target_semaphore(%63 : memref<!tpu.dma_semaphore, #tpu.memory_space<semaphore_mem>>)
    %64 = arith.index_cast %arg0 : i32 to index
    %c4 = arith.constant 4 : index
    %65 = memref.load %arg1[%64, %c4] : memref<2x8xi32, #tpu.memory_space<smem>>
    %c0_i32_54 = arith.constant 0 : i32
    %c9_i32_55 = arith.constant 9 : i32
    %66 = arith.maxsi %c0_i32_54, %65 : i32
    %67 = arith.minsi %c9_i32_55, %66 : i32
    %68 = arith.index_cast %arg0 : i32 to index
    %c4_56 = arith.constant 4 : index
    %69 = memref.load %arg2[%68, %c4_56] : memref<2x8xi32, #tpu.memory_space<smem>>
    %c0_i32_57 = arith.constant 0 : i32
    %c11_i32_58 = arith.constant 11 : i32
    %70 = arith.maxsi %c0_i32_57, %69 : i32
    %71 = arith.minsi %c11_i32_58, %70 : i32
    %c0_i32_59 = arith.constant 0 : i32
    %c4_i32 = arith.constant 4 : i32
    %c0_i32_60 = arith.constant 0 : i32
    %72 = tpu.memref_slice %arg3[%67, %c0_i32_60] : memref<10x5xf32, #tpu.memory_space<any>> -> memref<1x5xf32, #tpu.memory_space<any>>
    %c4_i32_61 = arith.constant 4 : i32
    %c0_i32_62 = arith.constant 0 : i32
    %73 = tpu.memref_slice %arg6[%c4_i32_61, %c0_i32_62] : memref<8x5xf32, #tpu.memory_space<vmem>> -> memref<1x5xf32, #tpu.memory_space<vmem>>
    %74 = tpu.memref_slice %arg8[%c0_i32_59, %c4_i32] : memref<2x8x!tpu.dma_semaphore, #tpu.memory_space<semaphore_mem>> -> memref<1x1x!tpu.dma_semaphore, #tpu.memory_space<semaphore_mem>>
    %75 = tpu.memref_squeeze %74 : memref<1x1x!tpu.dma_semaphore, #tpu.memory_space<semaphore_mem>> -> memref<!tpu.dma_semaphore, #tpu.memory_space<semaphore_mem>>
    tpu.enqueue_dma source(%72 : memref<1x5xf32, #tpu.memory_space<any>>) target(%73 : memref<1x5xf32, #tpu.memory_space<vmem>>) target_semaphore(%75 : memref<!tpu.dma_semaphore, #tpu.memory_space<semaphore_mem>>)
    %c1_i32_63 = arith.constant 1 : i32
    %c4_i32_64 = arith.constant 4 : i32
    %c0_i32_65 = arith.constant 0 : i32
    %76 = tpu.memref_slice %arg4[%71, %c0_i32_65] : memref<12x5xf32, #tpu.memory_space<any>> -> memref<1x5xf32, #tpu.memory_space<any>>
    %c4_i32_66 = arith.constant 4 : i32
    %c0_i32_67 = arith.constant 0 : i32
    %77 = tpu.memref_slice %arg7[%c4_i32_66, %c0_i32_67] : memref<8x5xf32, #tpu.memory_space<vmem>> -> memref<1x5xf32, #tpu.memory_space<vmem>>
    %78 = tpu.memref_slice %arg8[%c1_i32_63, %c4_i32_64] : memref<2x8x!tpu.dma_semaphore, #tpu.memory_space<semaphore_mem>> -> memref<1x1x!tpu.dma_semaphore, #tpu.memory_space<semaphore_mem>>
    %79 = tpu.memref_squeeze %78 : memref<1x1x!tpu.dma_semaphore, #tpu.memory_space<semaphore_mem>> -> memref<!tpu.dma_semaphore, #tpu.memory_space<semaphore_mem>>
    tpu.enqueue_dma source(%76 : memref<1x5xf32, #tpu.memory_space<any>>) target(%77 : memref<1x5xf32, #tpu.memory_space<vmem>>) target_semaphore(%79 : memref<!tpu.dma_semaphore, #tpu.memory_space<semaphore_mem>>)
    %80 = arith.index_cast %arg0 : i32 to index
    %c5 = arith.constant 5 : index
    %81 = memref.load %arg1[%80, %c5] : memref<2x8xi32, #tpu.memory_space<smem>>
    %c0_i32_68 = arith.constant 0 : i32
    %c9_i32_69 = arith.constant 9 : i32
    %82 = arith.maxsi %c0_i32_68, %81 : i32
    %83 = arith.minsi %c9_i32_69, %82 : i32
    %84 = arith.index_cast %arg0 : i32 to index
    %c5_70 = arith.constant 5 : index
    %85 = memref.load %arg2[%84, %c5_70] : memref<2x8xi32, #tpu.memory_space<smem>>
    %c0_i32_71 = arith.constant 0 : i32
    %c11_i32_72 = arith.constant 11 : i32
    %86 = arith.maxsi %c0_i32_71, %85 : i32
    %87 = arith.minsi %c11_i32_72, %86 : i32
    %c0_i32_73 = arith.constant 0 : i32
    %c5_i32 = arith.constant 5 : i32
    %c0_i32_74 = arith.constant 0 : i32
    %88 = tpu.memref_slice %arg3[%83, %c0_i32_74] : memref<10x5xf32, #tpu.memory_space<any>> -> memref<1x5xf32, #tpu.memory_space<any>>
    %c5_i32_75 = arith.constant 5 : i32
    %c0_i32_76 = arith.constant 0 : i32
    %89 = tpu.memref_slice %arg6[%c5_i32_75, %c0_i32_76] : memref<8x5xf32, #tpu.memory_space<vmem>> -> memref<1x5xf32, #tpu.memory_space<vmem>>
    %90 = tpu.memref_slice %arg8[%c0_i32_73, %c5_i32] : memref<2x8x!tpu.dma_semaphore, #tpu.memory_space<semaphore_mem>> -> memref<1x1x!tpu.dma_semaphore, #tpu.memory_space<semaphore_mem>>
    %91 = tpu.memref_squeeze %90 : memref<1x1x!tpu.dma_semaphore, #tpu.memory_space<semaphore_mem>> -> memref<!tpu.dma_semaphore, #tpu.memory_space<semaphore_mem>>
    tpu.enqueue_dma source(%88 : memref<1x5xf32, #tpu.memory_space<any>>) target(%89 : memref<1x5xf32, #tpu.memory_space<vmem>>) target_semaphore(%91 : memref<!tpu.dma_semaphore, #tpu.memory_space<semaphore_mem>>)
    %c1_i32_77 = arith.constant 1 : i32
    %c5_i32_78 = arith.constant 5 : i32
    %c0_i32_79 = arith.constant 0 : i32
    %92 = tpu.memref_slice %arg4[%87, %c0_i32_79] : memref<12x5xf32, #tpu.memory_space<any>> -> memref<1x5xf32, #tpu.memory_space<any>>
    %c5_i32_80 = arith.constant 5 : i32
    %c0_i32_81 = arith.constant 0 : i32
    %93 = tpu.memref_slice %arg7[%c5_i32_80, %c0_i32_81] : memref<8x5xf32, #tpu.memory_space<vmem>> -> memref<1x5xf32, #tpu.memory_space<vmem>>
    %94 = tpu.memref_slice %arg8[%c1_i32_77, %c5_i32_78] : memref<2x8x!tpu.dma_semaphore, #tpu.memory_space<semaphore_mem>> -> memref<1x1x!tpu.dma_semaphore, #tpu.memory_space<semaphore_mem>>
    %95 = tpu.memref_squeeze %94 : memref<1x1x!tpu.dma_semaphore, #tpu.memory_space<semaphore_mem>> -> memref<!tpu.dma_semaphore, #tpu.memory_space<semaphore_mem>>
    tpu.enqueue_dma source(%92 : memref<1x5xf32, #tpu.memory_space<any>>) target(%93 : memref<1x5xf32, #tpu.memory_space<vmem>>) target_semaphore(%95 : memref<!tpu.dma_semaphore, #tpu.memory_space<semaphore_mem>>)
    %96 = arith.index_cast %arg0 : i32 to index
    %c6 = arith.constant 6 : index
    %97 = memref.load %arg1[%96, %c6] : memref<2x8xi32, #tpu.memory_space<smem>>
    %c0_i32_82 = arith.constant 0 : i32
    %c9_i32_83 = arith.constant 9 : i32
    %98 = arith.maxsi %c0_i32_82, %97 : i32
    %99 = arith.minsi %c9_i32_83, %98 : i32
    %100 = arith.index_cast %arg0 : i32 to index
    %c6_84 = arith.constant 6 : index
    %101 = memref.load %arg2[%100, %c6_84] : memref<2x8xi32, #tpu.memory_space<smem>>
    %c0_i32_85 = arith.constant 0 : i32
    %c11_i32_86 = arith.constant 11 : i32
    %102 = arith.maxsi %c0_i32_85, %101 : i32
    %103 = arith.minsi %c11_i32_86, %102 : i32
    %c0_i32_87 = arith.constant 0 : i32
    %c6_i32 = arith.constant 6 : i32
    %c0_i32_88 = arith.constant 0 : i32
    %104 = tpu.memref_slice %arg3[%99, %c0_i32_88] : memref<10x5xf32, #tpu.memory_space<any>> -> memref<1x5xf32, #tpu.memory_space<any>>
    %c6_i32_89 = arith.constant 6 : i32
    %c0_i32_90 = arith.constant 0 : i32
    %105 = tpu.memref_slice %arg6[%c6_i32_89, %c0_i32_90] : memref<8x5xf32, #tpu.memory_space<vmem>> -> memref<1x5xf32, #tpu.memory_space<vmem>>
    %106 = tpu.memref_slice %arg8[%c0_i32_87, %c6_i32] : memref<2x8x!tpu.dma_semaphore, #tpu.memory_space<semaphore_mem>> -> memref<1x1x!tpu.dma_semaphore, #tpu.memory_space<semaphore_mem>>
    %107 = tpu.memref_squeeze %106 : memref<1x1x!tpu.dma_semaphore, #tpu.memory_space<semaphore_mem>> -> memref<!tpu.dma_semaphore, #tpu.memory_space<semaphore_mem>>
    tpu.enqueue_dma source(%104 : memref<1x5xf32, #tpu.memory_space<any>>) target(%105 : memref<1x5xf32, #tpu.memory_space<vmem>>) target_semaphore(%107 : memref<!tpu.dma_semaphore, #tpu.memory_space<semaphore_mem>>)
    %c1_i32_91 = arith.constant 1 : i32
    %c6_i32_92 = arith.constant 6 : i32
    %c0_i32_93 = arith.constant 0 : i32
    %108 = tpu.memref_slice %arg4[%103, %c0_i32_93] : memref<12x5xf32, #tpu.memory_space<any>> -> memref<1x5xf32, #tpu.memory_space<any>>
    %c6_i32_94 = arith.constant 6 : i32
    %c0_i32_95 = arith.constant 0 : i32
    %109 = tpu.memref_slice %arg7[%c6_i32_94, %c0_i32_95] : memref<8x5xf32, #tpu.memory_space<vmem>> -> memref<1x5xf32, #tpu.memory_space<vmem>>
    %110 = tpu.memref_slice %arg8[%c1_i32_91, %c6_i32_92] : memref<2x8x!tpu.dma_semaphore, #tpu.memory_space<semaphore_mem>> -> memref<1x1x!tpu.dma_semaphore, #tpu.memory_space<semaphore_mem>>
    %111 = tpu.memref_squeeze %110 : memref<1x1x!tpu.dma_semaphore, #tpu.memory_space<semaphore_mem>> -> memref<!tpu.dma_semaphore, #tpu.memory_space<semaphore_mem>>
    tpu.enqueue_dma source(%108 : memref<1x5xf32, #tpu.memory_space<any>>) target(%109 : memref<1x5xf32, #tpu.memory_space<vmem>>) target_semaphore(%111 : memref<!tpu.dma_semaphore, #tpu.memory_space<semaphore_mem>>)
    %112 = arith.index_cast %arg0 : i32 to index
    %c7 = arith.constant 7 : index
    %113 = memref.load %arg1[%112, %c7] : memref<2x8xi32, #tpu.memory_space<smem>>
    %c0_i32_96 = arith.constant 0 : i32
    %c9_i32_97 = arith.constant 9 : i32
    %114 = arith.maxsi %c0_i32_96, %113 : i32
    %115 = arith.minsi %c9_i32_97, %114 : i32
    %116 = arith.index_cast %arg0 : i32 to index
    %c7_98 = arith.constant 7 : index
    %117 = memref.load %arg2[%116, %c7_98] : memref<2x8xi32, #tpu.memory_space<smem>>
    %c0_i32_99 = arith.constant 0 : i32
    %c11_i32_100 = arith.constant 11 : i32
    %118 = arith.maxsi %c0_i32_99, %117 : i32
    %119 = arith.minsi %c11_i32_100, %118 : i32
    %c0_i32_101 = arith.constant 0 : i32
    %c7_i32 = arith.constant 7 : i32
    %c0_i32_102 = arith.constant 0 : i32
    %120 = tpu.memref_slice %arg3[%115, %c0_i32_102] : memref<10x5xf32, #tpu.memory_space<any>> -> memref<1x5xf32, #tpu.memory_space<any>>
    %c7_i32_103 = arith.constant 7 : i32
    %c0_i32_104 = arith.constant 0 : i32
    %121 = tpu.memref_slice %arg6[%c7_i32_103, %c0_i32_104] : memref<8x5xf32, #tpu.memory_space<vmem>> -> memref<1x5xf32, #tpu.memory_space<vmem>>
    %122 = tpu.memref_slice %arg8[%c0_i32_101, %c7_i32] : memref<2x8x!tpu.dma_semaphore, #tpu.memory_space<semaphore_mem>> -> memref<1x1x!tpu.dma_semaphore, #tpu.memory_space<semaphore_mem>>
    %123 = tpu.memref_squeeze %122 : memref<1x1x!tpu.dma_semaphore, #tpu.memory_space<semaphore_mem>> -> memref<!tpu.dma_semaphore, #tpu.memory_space<semaphore_mem>>
    tpu.enqueue_dma source(%120 : memref<1x5xf32, #tpu.memory_space<any>>) target(%121 : memref<1x5xf32, #tpu.memory_space<vmem>>) target_semaphore(%123 : memref<!tpu.dma_semaphore, #tpu.memory_space<semaphore_mem>>)
    %c1_i32_105 = arith.constant 1 : i32
    %c7_i32_106 = arith.constant 7 : i32
    %c0_i32_107 = arith.constant 0 : i32
    %124 = tpu.memref_slice %arg4[%119, %c0_i32_107] : memref<12x5xf32, #tpu.memory_space<any>> -> memref<1x5xf32, #tpu.memory_space<any>>
    %c7_i32_108 = arith.constant 7 : i32
    %c0_i32_109 = arith.constant 0 : i32
    %125 = tpu.memref_slice %arg7[%c7_i32_108, %c0_i32_109] : memref<8x5xf32, #tpu.memory_space<vmem>> -> memref<1x5xf32, #tpu.memory_space<vmem>>
    %126 = tpu.memref_slice %arg8[%c1_i32_105, %c7_i32_106] : memref<2x8x!tpu.dma_semaphore, #tpu.memory_space<semaphore_mem>> -> memref<1x1x!tpu.dma_semaphore, #tpu.memory_space<semaphore_mem>>
    %127 = tpu.memref_squeeze %126 : memref<1x1x!tpu.dma_semaphore, #tpu.memory_space<semaphore_mem>> -> memref<!tpu.dma_semaphore, #tpu.memory_space<semaphore_mem>>
    tpu.enqueue_dma source(%124 : memref<1x5xf32, #tpu.memory_space<any>>) target(%125 : memref<1x5xf32, #tpu.memory_space<vmem>>) target_semaphore(%127 : memref<!tpu.dma_semaphore, #tpu.memory_space<semaphore_mem>>)
    %c0_i32_110 = arith.constant 0 : i32
    %c0_i32_111 = arith.constant 0 : i32
    %c0_i32_112 = arith.constant 0 : i32
    %128 = tpu.memref_slice %arg3[%3, %c0_i32_112] : memref<10x5xf32, #tpu.memory_space<any>> -> memref<1x5xf32, #tpu.memory_space<any>>
    %c0_i32_113 = arith.constant 0 : i32
    %c0_i32_114 = arith.constant 0 : i32
    %129 = tpu.memref_slice %arg6[%c0_i32_113, %c0_i32_114] : memref<8x5xf32, #tpu.memory_space<vmem>> -> memref<1x5xf32, #tpu.memory_space<vmem>>
    %130 = tpu.memref_slice %arg8[%c0_i32_110, %c0_i32_111] : memref<2x8x!tpu.dma_semaphore, #tpu.memory_space<semaphore_mem>> -> memref<1x1x!tpu.dma_semaphore, #tpu.memory_space<semaphore_mem>>
    %131 = tpu.memref_squeeze %130 : memref<1x1x!tpu.dma_semaphore, #tpu.memory_space<semaphore_mem>> -> memref<!tpu.dma_semaphore, #tpu.memory_space<semaphore_mem>>
    tpu.wait_dma2 semaphore(%131 : memref<!tpu.dma_semaphore, #tpu.memory_space<semaphore_mem>>) src(%128 : memref<1x5xf32, #tpu.memory_space<any>>) dst(%129 : memref<1x5xf32, #tpu.memory_space<vmem>>)
    %c1_i32_115 = arith.constant 1 : i32
    %c0_i32_116 = arith.constant 0 : i32
    %c0_i32_117 = arith.constant 0 : i32
    %132 = tpu.memref_slice %arg4[%7, %c0_i32_117] : memref<12x5xf32, #tpu.memory_space<any>> -> memref<1x5xf32, #tpu.memory_space<any>>
    %c0_i32_118 = arith.constant 0 : i32
    %c0_i32_119 = arith.constant 0 : i32
    %133 = tpu.memref_slice %arg7[%c0_i32_118, %c0_i32_119] : memref<8x5xf32, #tpu.memory_space<vmem>> -> memref<1x5xf32, #tpu.memory_space<vmem>>
    %134 = tpu.memref_slice %arg8[%c1_i32_115, %c0_i32_116] : memref<2x8x!tpu.dma_semaphore, #tpu.memory_space<semaphore_mem>> -> memref<1x1x!tpu.dma_semaphore, #tpu.memory_space<semaphore_mem>>
    %135 = tpu.memref_squeeze %134 : memref<1x1x!tpu.dma_semaphore, #tpu.memory_space<semaphore_mem>> -> memref<!tpu.dma_semaphore, #tpu.memory_space<semaphore_mem>>
    tpu.wait_dma2 semaphore(%135 : memref<!tpu.dma_semaphore, #tpu.memory_space<semaphore_mem>>) src(%132 : memref<1x5xf32, #tpu.memory_space<any>>) dst(%133 : memref<1x5xf32, #tpu.memory_space<vmem>>)
    %c0_i32_120 = arith.constant 0 : i32
    %c1_i32_121 = arith.constant 1 : i32
    %c0_i32_122 = arith.constant 0 : i32
    %136 = tpu.memref_slice %arg3[%19, %c0_i32_122] : memref<10x5xf32, #tpu.memory_space<any>> -> memref<1x5xf32, #tpu.memory_space<any>>
    %c1_i32_123 = arith.constant 1 : i32
    %c0_i32_124 = arith.constant 0 : i32
    %137 = tpu.memref_slice %arg6[%c1_i32_123, %c0_i32_124] : memref<8x5xf32, #tpu.memory_space<vmem>> -> memref<1x5xf32, #tpu.memory_space<vmem>>
    %138 = tpu.memref_slice %arg8[%c0_i32_120, %c1_i32_121] : memref<2x8x!tpu.dma_semaphore, #tpu.memory_space<semaphore_mem>> -> memref<1x1x!tpu.dma_semaphore, #tpu.memory_space<semaphore_mem>>
    %139 = tpu.memref_squeeze %138 : memref<1x1x!tpu.dma_semaphore, #tpu.memory_space<semaphore_mem>> -> memref<!tpu.dma_semaphore, #tpu.memory_space<semaphore_mem>>
    tpu.wait_dma2 semaphore(%139 : memref<!tpu.dma_semaphore, #tpu.memory_space<semaphore_mem>>) src(%136 : memref<1x5xf32, #tpu.memory_space<any>>) dst(%137 : memref<1x5xf32, #tpu.memory_space<vmem>>)
    %c1_i32_125 = arith.constant 1 : i32
    %c1_i32_126 = arith.constant 1 : i32
    %c0_i32_127 = arith.constant 0 : i32
    %140 = tpu.memref_slice %arg4[%23, %c0_i32_127] : memref<12x5xf32, #tpu.memory_space<any>> -> memref<1x5xf32, #tpu.memory_space<any>>
    %c1_i32_128 = arith.constant 1 : i32
    %c0_i32_129 = arith.constant 0 : i32
    %141 = tpu.memref_slice %arg7[%c1_i32_128, %c0_i32_129] : memref<8x5xf32, #tpu.memory_space<vmem>> -> memref<1x5xf32, #tpu.memory_space<vmem>>
    %142 = tpu.memref_slice %arg8[%c1_i32_125, %c1_i32_126] : memref<2x8x!tpu.dma_semaphore, #tpu.memory_space<semaphore_mem>> -> memref<1x1x!tpu.dma_semaphore, #tpu.memory_space<semaphore_mem>>
    %143 = tpu.memref_squeeze %142 : memref<1x1x!tpu.dma_semaphore, #tpu.memory_space<semaphore_mem>> -> memref<!tpu.dma_semaphore, #tpu.memory_space<semaphore_mem>>
    tpu.wait_dma2 semaphore(%143 : memref<!tpu.dma_semaphore, #tpu.memory_space<semaphore_mem>>) src(%140 : memref<1x5xf32, #tpu.memory_space<any>>) dst(%141 : memref<1x5xf32, #tpu.memory_space<vmem>>)
    %c0_i32_130 = arith.constant 0 : i32
    %c2_i32_131 = arith.constant 2 : i32
    %c0_i32_132 = arith.constant 0 : i32
    %144 = tpu.memref_slice %arg3[%35, %c0_i32_132] : memref<10x5xf32, #tpu.memory_space<any>> -> memref<1x5xf32, #tpu.memory_space<any>>
    %c2_i32_133 = arith.constant 2 : i32
    %c0_i32_134 = arith.constant 0 : i32
    %145 = tpu.memref_slice %arg6[%c2_i32_133, %c0_i32_134] : memref<8x5xf32, #tpu.memory_space<vmem>> -> memref<1x5xf32, #tpu.memory_space<vmem>>
    %146 = tpu.memref_slice %arg8[%c0_i32_130, %c2_i32_131] : memref<2x8x!tpu.dma_semaphore, #tpu.memory_space<semaphore_mem>> -> memref<1x1x!tpu.dma_semaphore, #tpu.memory_space<semaphore_mem>>
    %147 = tpu.memref_squeeze %146 : memref<1x1x!tpu.dma_semaphore, #tpu.memory_space<semaphore_mem>> -> memref<!tpu.dma_semaphore, #tpu.memory_space<semaphore_mem>>
    tpu.wait_dma2 semaphore(%147 : memref<!tpu.dma_semaphore, #tpu.memory_space<semaphore_mem>>) src(%144 : memref<1x5xf32, #tpu.memory_space<any>>) dst(%145 : memref<1x5xf32, #tpu.memory_space<vmem>>)
    %c1_i32_135 = arith.constant 1 : i32
    %c2_i32_136 = arith.constant 2 : i32
    %c0_i32_137 = arith.constant 0 : i32
    %148 = tpu.memref_slice %arg4[%39, %c0_i32_137] : memref<12x5xf32, #tpu.memory_space<any>> -> memref<1x5xf32, #tpu.memory_space<any>>
    %c2_i32_138 = arith.constant 2 : i32
    %c0_i32_139 = arith.constant 0 : i32
    %149 = tpu.memref_slice %arg7[%c2_i32_138, %c0_i32_139] : memref<8x5xf32, #tpu.memory_space<vmem>> -> memref<1x5xf32, #tpu.memory_space<vmem>>
    %150 = tpu.memref_slice %arg8[%c1_i32_135, %c2_i32_136] : memref<2x8x!tpu.dma_semaphore, #tpu.memory_space<semaphore_mem>> -> memref<1x1x!tpu.dma_semaphore, #tpu.memory_space<semaphore_mem>>
    %151 = tpu.memref_squeeze %150 : memref<1x1x!tpu.dma_semaphore, #tpu.memory_space<semaphore_mem>> -> memref<!tpu.dma_semaphore, #tpu.memory_space<semaphore_mem>>
    tpu.wait_dma2 semaphore(%151 : memref<!tpu.dma_semaphore, #tpu.memory_space<semaphore_mem>>) src(%148 : memref<1x5xf32, #tpu.memory_space<any>>) dst(%149 : memref<1x5xf32, #tpu.memory_space<vmem>>)
    %c0_i32_140 = arith.constant 0 : i32
    %c3_i32_141 = arith.constant 3 : i32
    %c0_i32_142 = arith.constant 0 : i32
    %152 = tpu.memref_slice %arg3[%51, %c0_i32_142] : memref<10x5xf32, #tpu.memory_space<any>> -> memref<1x5xf32, #tpu.memory_space<any>>
    %c3_i32_143 = arith.constant 3 : i32
    %c0_i32_144 = arith.constant 0 : i32
    %153 = tpu.memref_slice %arg6[%c3_i32_143, %c0_i32_144] : memref<8x5xf32, #tpu.memory_space<vmem>> -> memref<1x5xf32, #tpu.memory_space<vmem>>
    %154 = tpu.memref_slice %arg8[%c0_i32_140, %c3_i32_141] : memref<2x8x!tpu.dma_semaphore, #tpu.memory_space<semaphore_mem>> -> memref<1x1x!tpu.dma_semaphore, #tpu.memory_space<semaphore_mem>>
    %155 = tpu.memref_squeeze %154 : memref<1x1x!tpu.dma_semaphore, #tpu.memory_space<semaphore_mem>> -> memref<!tpu.dma_semaphore, #tpu.memory_space<semaphore_mem>>
    tpu.wait_dma2 semaphore(%155 : memref<!tpu.dma_semaphore, #tpu.memory_space<semaphore_mem>>) src(%152 : memref<1x5xf32, #tpu.memory_space<any>>) dst(%153 : memref<1x5xf32, #tpu.memory_space<vmem>>)
    %c1_i32_145 = arith.constant 1 : i32
    %c3_i32_146 = arith.constant 3 : i32
    %c0_i32_147 = arith.constant 0 : i32
    %156 = tpu.memref_slice %arg4[%55, %c0_i32_147] : memref<12x5xf32, #tpu.memory_space<any>> -> memref<1x5xf32, #tpu.memory_space<any>>
    %c3_i32_148 = arith.constant 3 : i32
    %c0_i32_149 = arith.constant 0 : i32
    %157 = tpu.memref_slice %arg7[%c3_i32_148, %c0_i32_149] : memref<8x5xf32, #tpu.memory_space<vmem>> -> memref<1x5xf32, #tpu.memory_space<vmem>>
    %158 = tpu.memref_slice %arg8[%c1_i32_145, %c3_i32_146] : memref<2x8x!tpu.dma_semaphore, #tpu.memory_space<semaphore_mem>> -> memref<1x1x!tpu.dma_semaphore, #tpu.memory_space<semaphore_mem>>
    %159 = tpu.memref_squeeze %158 : memref<1x1x!tpu.dma_semaphore, #tpu.memory_space<semaphore_mem>> -> memref<!tpu.dma_semaphore, #tpu.memory_space<semaphore_mem>>
    tpu.wait_dma2 semaphore(%159 : memref<!tpu.dma_semaphore, #tpu.memory_space<semaphore_mem>>) src(%156 : memref<1x5xf32, #tpu.memory_space<any>>) dst(%157 : memref<1x5xf32, #tpu.memory_space<vmem>>)
    %c0_i32_150 = arith.constant 0 : i32
    %c4_i32_151 = arith.constant 4 : i32
    %c0_i32_152 = arith.constant 0 : i32
    %160 = tpu.memref_slice %arg3[%67, %c0_i32_152] : memref<10x5xf32, #tpu.memory_space<any>> -> memref<1x5xf32, #tpu.memory_space<any>>
    %c4_i32_153 = arith.constant 4 : i32
    %c0_i32_154 = arith.constant 0 : i32
    %161 = tpu.memref_slice %arg6[%c4_i32_153, %c0_i32_154] : memref<8x5xf32, #tpu.memory_space<vmem>> -> memref<1x5xf32, #tpu.memory_space<vmem>>
    %162 = tpu.memref_slice %arg8[%c0_i32_150, %c4_i32_151] : memref<2x8x!tpu.dma_semaphore, #tpu.memory_space<semaphore_mem>> -> memref<1x1x!tpu.dma_semaphore, #tpu.memory_space<semaphore_mem>>
    %163 = tpu.memref_squeeze %162 : memref<1x1x!tpu.dma_semaphore, #tpu.memory_space<semaphore_mem>> -> memref<!tpu.dma_semaphore, #tpu.memory_space<semaphore_mem>>
    tpu.wait_dma2 semaphore(%163 : memref<!tpu.dma_semaphore, #tpu.memory_space<semaphore_mem>>) src(%160 : memref<1x5xf32, #tpu.memory_space<any>>) dst(%161 : memref<1x5xf32, #tpu.memory_space<vmem>>)
    %c1_i32_155 = arith.constant 1 : i32
    %c4_i32_156 = arith.constant 4 : i32
    %c0_i32_157 = arith.constant 0 : i32
    %164 = tpu.memref_slice %arg4[%71, %c0_i32_157] : memref<12x5xf32, #tpu.memory_space<any>> -> memref<1x5xf32, #tpu.memory_space<any>>
    %c4_i32_158 = arith.constant 4 : i32
    %c0_i32_159 = arith.constant 0 : i32
    %165 = tpu.memref_slice %arg7[%c4_i32_158, %c0_i32_159] : memref<8x5xf32, #tpu.memory_space<vmem>> -> memref<1x5xf32, #tpu.memory_space<vmem>>
    %166 = tpu.memref_slice %arg8[%c1_i32_155, %c4_i32_156] : memref<2x8x!tpu.dma_semaphore, #tpu.memory_space<semaphore_mem>> -> memref<1x1x!tpu.dma_semaphore, #tpu.memory_space<semaphore_mem>>
    %167 = tpu.memref_squeeze %166 : memref<1x1x!tpu.dma_semaphore, #tpu.memory_space<semaphore_mem>> -> memref<!tpu.dma_semaphore, #tpu.memory_space<semaphore_mem>>
    tpu.wait_dma2 semaphore(%167 : memref<!tpu.dma_semaphore, #tpu.memory_space<semaphore_mem>>) src(%164 : memref<1x5xf32, #tpu.memory_space<any>>) dst(%165 : memref<1x5xf32, #tpu.memory_space<vmem>>)
    %c0_i32_160 = arith.constant 0 : i32
    %c5_i32_161 = arith.constant 5 : i32
    %c0_i32_162 = arith.constant 0 : i32
    %168 = tpu.memref_slice %arg3[%83, %c0_i32_162] : memref<10x5xf32, #tpu.memory_space<any>> -> memref<1x5xf32, #tpu.memory_space<any>>
    %c5_i32_163 = arith.constant 5 : i32
    %c0_i32_164 = arith.constant 0 : i32
    %169 = tpu.memref_slice %arg6[%c5_i32_163, %c0_i32_164] : memref<8x5xf32, #tpu.memory_space<vmem>> -> memref<1x5xf32, #tpu.memory_space<vmem>>
    %170 = tpu.memref_slice %arg8[%c0_i32_160, %c5_i32_161] : memref<2x8x!tpu.dma_semaphore, #tpu.memory_space<semaphore_mem>> -> memref<1x1x!tpu.dma_semaphore, #tpu.memory_space<semaphore_mem>>
    %171 = tpu.memref_squeeze %170 : memref<1x1x!tpu.dma_semaphore, #tpu.memory_space<semaphore_mem>> -> memref<!tpu.dma_semaphore, #tpu.memory_space<semaphore_mem>>
    tpu.wait_dma2 semaphore(%171 : memref<!tpu.dma_semaphore, #tpu.memory_space<semaphore_mem>>) src(%168 : memref<1x5xf32, #tpu.memory_space<any>>) dst(%169 : memref<1x5xf32, #tpu.memory_space<vmem>>)
    %c1_i32_165 = arith.constant 1 : i32
    %c5_i32_166 = arith.constant 5 : i32
    %c0_i32_167 = arith.constant 0 : i32
    %172 = tpu.memref_slice %arg4[%87, %c0_i32_167] : memref<12x5xf32, #tpu.memory_space<any>> -> memref<1x5xf32, #tpu.memory_space<any>>
    %c5_i32_168 = arith.constant 5 : i32
    %c0_i32_169 = arith.constant 0 : i32
    %173 = tpu.memref_slice %arg7[%c5_i32_168, %c0_i32_169] : memref<8x5xf32, #tpu.memory_space<vmem>> -> memref<1x5xf32, #tpu.memory_space<vmem>>
    %174 = tpu.memref_slice %arg8[%c1_i32_165, %c5_i32_166] : memref<2x8x!tpu.dma_semaphore, #tpu.memory_space<semaphore_mem>> -> memref<1x1x!tpu.dma_semaphore, #tpu.memory_space<semaphore_mem>>
    %175 = tpu.memref_squeeze %174 : memref<1x1x!tpu.dma_semaphore, #tpu.memory_space<semaphore_mem>> -> memref<!tpu.dma_semaphore, #tpu.memory_space<semaphore_mem>>
    tpu.wait_dma2 semaphore(%175 : memref<!tpu.dma_semaphore, #tpu.memory_space<semaphore_mem>>) src(%172 : memref<1x5xf32, #tpu.memory_space<any>>) dst(%173 : memref<1x5xf32, #tpu.memory_space<vmem>>)
    %c0_i32_170 = arith.constant 0 : i32
    %c6_i32_171 = arith.constant 6 : i32
    %c0_i32_172 = arith.constant 0 : i32
    %176 = tpu.memref_slice %arg3[%99, %c0_i32_172] : memref<10x5xf32, #tpu.memory_space<any>> -> memref<1x5xf32, #tpu.memory_space<any>>
    %c6_i32_173 = arith.constant 6 : i32
    %c0_i32_174 = arith.constant 0 : i32
    %177 = tpu.memref_slice %arg6[%c6_i32_173, %c0_i32_174] : memref<8x5xf32, #tpu.memory_space<vmem>> -> memref<1x5xf32, #tpu.memory_space<vmem>>
    %178 = tpu.memref_slice %arg8[%c0_i32_170, %c6_i32_171] : memref<2x8x!tpu.dma_semaphore, #tpu.memory_space<semaphore_mem>> -> memref<1x1x!tpu.dma_semaphore, #tpu.memory_space<semaphore_mem>>
    %179 = tpu.memref_squeeze %178 : memref<1x1x!tpu.dma_semaphore, #tpu.memory_space<semaphore_mem>> -> memref<!tpu.dma_semaphore, #tpu.memory_space<semaphore_mem>>
    tpu.wait_dma2 semaphore(%179 : memref<!tpu.dma_semaphore, #tpu.memory_space<semaphore_mem>>) src(%176 : memref<1x5xf32, #tpu.memory_space<any>>) dst(%177 : memref<1x5xf32, #tpu.memory_space<vmem>>)
    %c1_i32_175 = arith.constant 1 : i32
    %c6_i32_176 = arith.constant 6 : i32
    %c0_i32_177 = arith.constant 0 : i32
    %180 = tpu.memref_slice %arg4[%103, %c0_i32_177] : memref<12x5xf32, #tpu.memory_space<any>> -> memref<1x5xf32, #tpu.memory_space<any>>
    %c6_i32_178 = arith.constant 6 : i32
    %c0_i32_179 = arith.constant 0 : i32
    %181 = tpu.memref_slice %arg7[%c6_i32_178, %c0_i32_179] : memref<8x5xf32, #tpu.memory_space<vmem>> -> memref<1x5xf32, #tpu.memory_space<vmem>>
    %182 = tpu.memref_slice %arg8[%c1_i32_175, %c6_i32_176] : memref<2x8x!tpu.dma_semaphore, #tpu.memory_space<semaphore_mem>> -> memref<1x1x!tpu.dma_semaphore, #tpu.memory_space<semaphore_mem>>
    %183 = tpu.memref_squeeze %182 : memref<1x1x!tpu.dma_semaphore, #tpu.memory_space<semaphore_mem>> -> memref<!tpu.dma_semaphore, #tpu.memory_space<semaphore_mem>>
    tpu.wait_dma2 semaphore(%183 : memref<!tpu.dma_semaphore, #tpu.memory_space<semaphore_mem>>) src(%180 : memref<1x5xf32, #tpu.memory_space<any>>) dst(%181 : memref<1x5xf32, #tpu.memory_space<vmem>>)
    %c0_i32_180 = arith.constant 0 : i32
    %c7_i32_181 = arith.constant 7 : i32
    %c0_i32_182 = arith.constant 0 : i32
    %184 = tpu.memref_slice %arg3[%115, %c0_i32_182] : memref<10x5xf32, #tpu.memory_space<any>> -> memref<1x5xf32, #tpu.memory_space<any>>
    %c7_i32_183 = arith.constant 7 : i32
    %c0_i32_184 = arith.constant 0 : i32
    %185 = tpu.memref_slice %arg6[%c7_i32_183, %c0_i32_184] : memref<8x5xf32, #tpu.memory_space<vmem>> -> memref<1x5xf32, #tpu.memory_space<vmem>>
    %186 = tpu.memref_slice %arg8[%c0_i32_180, %c7_i32_181] : memref<2x8x!tpu.dma_semaphore, #tpu.memory_space<semaphore_mem>> -> memref<1x1x!tpu.dma_semaphore, #tpu.memory_space<semaphore_mem>>
    %187 = tpu.memref_squeeze %186 : memref<1x1x!tpu.dma_semaphore, #tpu.memory_space<semaphore_mem>> -> memref<!tpu.dma_semaphore, #tpu.memory_space<semaphore_mem>>
    tpu.wait_dma2 semaphore(%187 : memref<!tpu.dma_semaphore, #tpu.memory_space<semaphore_mem>>) src(%184 : memref<1x5xf32, #tpu.memory_space<any>>) dst(%185 : memref<1x5xf32, #tpu.memory_space<vmem>>)
    %c1_i32_185 = arith.constant 1 : i32
    %c7_i32_186 = arith.constant 7 : i32
    %c0_i32_187 = arith.constant 0 : i32
    %188 = tpu.memref_slice %arg4[%119, %c0_i32_187] : memref<12x5xf32, #tpu.memory_space<any>> -> memref<1x5xf32, #tpu.memory_space<any>>
    %c7_i32_188 = arith.constant 7 : i32
    %c0_i32_189 = arith.constant 0 : i32
    %189 = tpu.memref_slice %arg7[%c7_i32_188, %c0_i32_189] : memref<8x5xf32, #tpu.memory_space<vmem>> -> memref<1x5xf32, #tpu.memory_space<vmem>>
    %190 = tpu.memref_slice %arg8[%c1_i32_185, %c7_i32_186] : memref<2x8x!tpu.dma_semaphore, #tpu.memory_space<semaphore_mem>> -> memref<1x1x!tpu.dma_semaphore, #tpu.memory_space<semaphore_mem>>
    %191 = tpu.memref_squeeze %190 : memref<1x1x!tpu.dma_semaphore, #tpu.memory_space<semaphore_mem>> -> memref<!tpu.dma_semaphore, #tpu.memory_space<semaphore_mem>>
    tpu.wait_dma2 semaphore(%191 : memref<!tpu.dma_semaphore, #tpu.memory_space<semaphore_mem>>) src(%188 : memref<1x5xf32, #tpu.memory_space<any>>) dst(%189 : memref<1x5xf32, #tpu.memory_space<vmem>>)
    %c0_190 = arith.constant 0 : index
    %c0_191 = arith.constant 0 : index
    %192 = vector.load %arg6[%c0_190, %c0_191] : memref<8x5xf32, #tpu.memory_space<vmem>>, vector<8x5xf32>
    %c0_192 = arith.constant 0 : index
    %c0_193 = arith.constant 0 : index
    %193 = vector.load %arg7[%c0_192, %c0_193] : memref<8x5xf32, #tpu.memory_space<vmem>>, vector<8x5xf32>
    %194 = arith.mulf %192, %193 : vector<8x5xf32>
    %cst = arith.constant dense<0.000000e+00> : vector<8xf32>
    %195 = vector.multi_reduction <add>, %194, %cst [1] : vector<8x5xf32> to vector<8xf32>
    %196 = vector.shape_cast %195 : vector<8xf32> to vector<8x1xf32>
    %cst_194 = arith.constant dense<0.000000e+00> : vector<1xf32>
    %197 = vector.multi_reduction <add>, %196, %cst_194 [0] : vector<8x1xf32> to vector<1xf32>
    %198 = vector.shape_cast %197 : vector<1xf32> to vector<1x1xf32>
    %199 = vector.shape_cast %198 : vector<1x1xf32> to vector<1x1x1xf32>
    %200 = vector.shape_cast %199 : vector<1x1x1xf32> to vector<1x1x1xf32>
    %201 = vector.broadcast %200 : vector<1x1x1xf32> to vector<1x1x128xf32>
    %c0_195 = arith.constant 0 : index
    %c0_196 = arith.constant 0 : index
    %c0_197 = arith.constant 0 : index
    %202 = vector.load %arg5[%c0_195, %c0_196, %c0_197] : memref<1x1x128xf32, #tpu.memory_space<vmem>>, vector<1x1x128xf32>
    tpu.vector_store %arg5[%c0_195, %c0_196, %c0_197], %201 {strides = array<i32>} : memref<1x1x128xf32, #tpu.memory_space<vmem>>, vector<1x1x128xf32>,
    return
  }
  func.func @transform_2(%arg0: i32, %arg1: memref<2x8xi32, #tpu.memory_space<smem>>, %arg2: memref<2x8xi32, #tpu.memory_space<smem>>) -> (i32, i32, i32) {
    %c0_i32 = arith.constant 0 : i32
    %c0_i32_0 = arith.constant 0 : i32
    %c0_i32_1 = arith.constant 0 : i32
    return %arg0, %c0_i32, %c0_i32_0 : i32, i32, i32
  }
}

</mosaic_0001>

<llo_original>
// kernel: tpu_custom_call.1
$region0: #{tpu_custom_call.1}
  #allocation0 [shape = 'u32[]', space=smem, size = 0x4, offset = 0x4, fixed_abs, tag = 'smem constant byte address 0x4 - core index']
  #allocation1 [shape = 'u32[72,128]{1,0:T(1,128)}', space=vmem, size = 0x9000, scoped, tag = 'internal scratch']
  #allocation2 [shape = 'f32[8,5]{1,0:T(8,128)}', space=vmem, size = 0x1000, scoped, tag = 'scratch operand']
  #allocation3 [shape = 'f32[8,5]{1,0:T(8,128)}', space=vmem, size = 0x1000, scoped, tag = 'scratch operand']
  #allocation4 [shape = 's32[16]{0}', space=sflag, size = 0x40, scoped, tag = 'scratch operand']
  #allocation5 [shape = 's32[1]{0}', space=sflag, size = 0x4, scoped, tag = 'scoped memory for tpu_custom_call.1']
  #allocation6 [shape = 'u8[1024]{0}', space=smem, size = 0x400, scoped, tag = 'prefetched SMEM operand 0']
  #allocation7 [shape = 'u8[1024]{0}', space=smem, size = 0x400, scoped, tag = 'prefetched SMEM operand 1']
  #allocation10 [shape = 's32[]', space=sflag, size = 0x4, offset = 0, fixed_abs, tag = 'sflag constant byte address 0x0 - dummy sync flag']
  #allocation11 [shape = 's32[]', space=sflag, size = 0x4, offset = 0, fixed_abs, tag = 'sflag constant byte address 0x0 - dummy sync flag']
  #allocation12 [shape = 's32[]', space=sflag, size = 0x4, offset = 0, fixed_abs, tag = 'sflag constant byte address 0x0 - dummy sync flag']
  #allocation13 [shape = 's32[]', space=sflag, size = 0x4, offset = 0, fixed_abs, tag = 'sflag constant byte address 0x0 - dummy sync flag']
  #allocation14 [shape = 's32[]', space=sflag, size = 0x4, offset = 0, fixed_abs, tag = 'sflag constant byte address 0x0 - dummy sync flag']
  #allocation15 [shape = 's32[]', space=sflag, size = 0x4, offset = 0, fixed_abs, tag = 'sflag constant byte address 0x0 - dummy sync flag']
  #allocation16 [shape = 's32[]', space=sflag, size = 0x4, offset = 0, fixed_abs, tag = 'sflag constant byte address 0x0 - dummy sync flag']
  #allocation17 [shape = 's32[]', space=sflag, size = 0x4, offset = 0, fixed_abs, tag = 'sflag constant byte address 0x0 - dummy sync flag']
  #allocation18 [shape = 's32[]', space=sflag, size = 0x4, offset = 0, fixed_abs, tag = 'sflag constant byte address 0x0 - dummy sync flag']
  #allocation19 [shape = 's32[]', space=sflag, size = 0x4, offset = 0, fixed_abs, tag = 'sflag constant byte address 0x0 - dummy sync flag']
  #allocation20 [shape = 's32[]', space=sflag, size = 0x4, offset = 0, fixed_abs, tag = 'sflag constant byte address 0x0 - dummy sync flag']
  #allocation21 [shape = 's32[]', space=sflag, size = 0x4, offset = 0, fixed_abs, tag = 'sflag constant byte address 0x0 - dummy sync flag']
  #allocation22 [shape = 's32[]', space=sflag, size = 0x4, offset = 0, fixed_abs, tag = 'sflag constant byte address 0x0 - dummy sync flag']
  #allocation23 [shape = 's32[]', space=sflag, size = 0x4, offset = 0, fixed_abs, tag = 'sflag constant byte address 0x0 - dummy sync flag']
  #allocation24 [shape = 's32[]', space=sflag, size = 0x4, offset = 0, fixed_abs, tag = 'sflag constant byte address 0x0 - dummy sync flag']
  #allocation25 [shape = 's32[]', space=sflag, size = 0x4, offset = 0, fixed_abs, tag = 'sflag constant byte address 0x0 - dummy sync flag']
  %s0 = inlined_call_operand.vmem [shape: s32[2,8], index: 0, kind: input, shape index: {}]
  %s1 = inlined_call_operand.vmem [shape: s32[2,8], index: 1, kind: input, shape index: {}]
  %s2 = inlined_call_operand.vmem [shape: f32[10,5], index: 2, kind: input, shape index: {}]
  %s3 = inlined_call_operand.vmem [shape: f32[12,5], index: 3, kind: input, shape index: {}]
  %s4 = inlined_call_operand.hbm [shape: f32[2,1,128], index: 4, kind: output, shape index: {}]
  %s5 = sld [smem:[#allocation0]]
  $region505: #{tpu_custom_call.1} parent=0
    _
  %s7 = ssub.s32 1, %s5
  %s8 = scalar_select 0, %s7, %s5
  %s10 = sshll.u32 %s0, 4
  %s11 = int_to_ptr.vmem [resolvable:$true] %s10
  %13 = dma.vmem_to_smem %s11, 32, [#allocation6], [#allocation5]
  %s15 = sshll.u32 %s1, 4
  %s16 = int_to_ptr.vmem [resolvable:$true] %s15
  %18 = dma.vmem_to_smem %s16, 32, [#allocation7], [#allocation5]
  %20 = dma.done [#allocation5], 64
  %21 = sfence
  $region1: #{tpu_custom_call.1} parent=0
    #allocation8 [shape = 'u8[1024]{0}', space=vmem, size = 0x400, scoped, tag = 'output window, operand 0']
    #allocation9 [shape = 's32[2]{0}', space=sflag, size = 0x8, scoped, tag = 'scoped memory for tpu_custom_call.1']
    %22 = vsyncpa [#allocation9], 0
    %s23 = scalar_lea.sflag [#allocation9], 1
    %24 = vsyncpa %s23, 0
    loop: start=0, step=1, limit=3
    $region2: #{tpu_custom_call.1} parent=1 // loop_pre_header
      _
    $region3: #{tpu_custom_call.1} parent=1 // loop_header
      %s26 = sphi 0, %s30
      %p27 = scmp.ge.s32.totalorder %s26, 3
      %s35 = sphi 0, %s37
      %s38 = sphi 0, %s35
      %s48 = sphi 0, %s38
    $region4: #{tpu_custom_call.1} parent=1 // loop_header_branch
      %29 = sbr.rel (%p27) target = $region8
    $region5: #{tpu_custom_call.1} parent=1 // loop_body
      %s31 = ssub.s32 %s26, 1
      %s32 = sadd.s32 %s26, 1
      %s33 = ssub.s32 %s26, %s32
      %p34 = scmp.eq.s32.totalorder %s33, 0
      %s36 = sadd.s32 %s35, 1
      %s37 = scalar_select %p34, %s35, %s36
      %p39 = pneg %p34
      %p40 = scmp.eq.s32.totalorder %s26, 1
      %p41 = por %p39, %p40
      %p42 = scmp.ne.s32.totalorder %s35, %s38
      %p43 = scmp.eq.s32.totalorder %s26, 0
      %p44 = por %p42, %p43
      %p45 = scmp.ne.s32.totalorder %s35, %s38
      %p46 = scmp.eq.s32.totalorder %s31, 1
      %p47 = por %p45, %p46
      %p49 = scmp.ne.s32.totalorder %s38, %s48
      %p50 = scmp.eq.s32.totalorder %s31, 0
      %p51 = por %p49, %p50
      %p52 = scmp.lt.s32.totalorder %s26, 2
      // Predicated region
      $region9: #{tpu_custom_call.1} parent=5 // pred_check
        %p53 = pneg %p52
      $region10: #{tpu_custom_call.1} parent=5 // pred_check_branch
        %55 = sbr.rel (%p53) target = $region12
      $region11: #{tpu_custom_call.1} parent=5 // pred_region
        %p56 = pneg %p44
        %p57 = pneg %p41
        %s58 = sand.u32 %s35, 1
        %s59 = scalar_lea.sflag [#allocation9], %s58
        %s60 = sand.u32 %s35, 1
        %s61 = scalar_lea.vmem [#allocation8], %s60
        %s62 = smul.u32 %s26, 128
        %s63 = sld [smem:[#allocation6 + %s62]]
        %p64 = scmp.gt.s32.totalorder %s63, 0
        %s65 = scalar_select %p64, %s63, 0
        %p66 = scmp.lt.s32.totalorder %s65, 9
        %s67 = scalar_select %p66, %s65, 9
        %s68 = sld [smem:[#allocation7 + %s62]]
        %p69 = scmp.gt.s32.totalorder %s68, 0
        %s70 = scalar_select %p69, %s68, 0
        %p71 = scmp.lt.s32.totalorder %s70, 11
        %s72 = scalar_select %p71, %s70, 11
        %s73 = scalar_lea.vmem %s2, %s67
        // Predicated region
        $region13: #{tpu_custom_call.1} parent=11 // pred_check
          _
        $region14: #{tpu_custom_call.1} parent=11 // pred_check_branch
          %75 = sbr.rel target = $region16
        $region15: #{tpu_custom_call.1} parent=11 // pred_region
          // Predicated region
          $region28: #{tpu_custom_call.1} parent=15 // pred_check
            _
          $region29: #{tpu_custom_call.1} parent=15 // pred_check_branch
            %91 = sbr.rel (0) target = $region31
          $region30: #{tpu_custom_call.1} parent=15 // pred_region
            %s93 = ssub.s32 2, 1
            loop: start=0, step=1, limit=1
            $region32: #{tpu_custom_call.1} parent=30 // loop_pre_header
              _
            $region33: #{tpu_custom_call.1} parent=30 // loop_header
              %s95 = sphi 0, %s99
              %p96 = scmp.ge.s32.totalorder %s95, 1
              %s100 = sphi %s73, %s73
              %s101 = sphi [#allocation2], [#allocation2]
            $region34: #{tpu_custom_call.1} parent=30 // loop_header_branch
              %98 = sbr.rel (%p96) target = $region38
            $region35: #{tpu_custom_call.1} parent=30 // loop_body
              %v102 = vld [vmem:[%s100] sm:%s93]
              %103 = vst [vmem:[%s101] sm:%s93] %v102
            $region36: #{tpu_custom_call.1} parent=30 // loop_footer
              %s99 = sadd.s32 1, %s95
            $region37: #{tpu_custom_call.1} parent=30 // loop_footer_branch
              %94 = sbr.rel target = $region33
            $region38: #{tpu_custom_call.1} parent=30 // loop_exit
              _
          $region31: #{tpu_custom_call.1} parent=15 // pred_fallthru
            _
        $region16: #{tpu_custom_call.1} parent=11 // pred_fallthru
          _
        // Predicated region
        $region17: #{tpu_custom_call.1} parent=11 // pred_check
          _
        $region18: #{tpu_custom_call.1} parent=11 // pred_check_branch
          %77 = sbr.rel (0) target = $region20
        $region19: #{tpu_custom_call.1} parent=11 // pred_region
          %s79 = ssub.s32 2, 1
          loop: start=0, step=1, limit=1
          $region21: #{tpu_custom_call.1} parent=19 // loop_pre_header
            _
          $region22: #{tpu_custom_call.1} parent=19 // loop_header
            %s81 = sphi 0, %s85
            %p82 = scmp.ge.s32.totalorder %s81, 1
            %s86 = sphi %s73, %s73
            %s87 = sphi [#allocation2], [#allocation2]
          $region23: #{tpu_custom_call.1} parent=19 // loop_header_branch
            %84 = sbr.rel (%p82) target = $region27
          $region24: #{tpu_custom_call.1} parent=19 // loop_body
            %v88 = vld [vmem:[%s86] sm:%s79]
            %89 = vst [vmem:[%s87] sm:%s79] %v88
          $region25: #{tpu_custom_call.1} parent=19 // loop_footer
            %s85 = sadd.s32 1, %s81
          $region26: #{tpu_custom_call.1} parent=19 // loop_footer_branch
            %80 = sbr.rel target = $region22
          $region27: #{tpu_custom_call.1} parent=19 // loop_exit
            _
        $region20: #{tpu_custom_call.1} parent=11 // pred_fallthru
          _
        // Predicated region
        $region39: #{tpu_custom_call.1} parent=11 // pred_check
          _
        $region40: #{tpu_custom_call.1} parent=11 // pred_check_branch
          %106 = sbr.rel (0) target = $region42
        $region41: #{tpu_custom_call.1} parent=11 // pred_region
          %107 = vsyncadd [#allocation4], 16
        $region42: #{tpu_custom_call.1} parent=11 // pred_fallthru
          _
        %s108 = scalar_lea.vmem %s3, %s72
        %s109 = scalar_lea.sflag [#allocation4], 8
        // Predicated region
        $region43: #{tpu_custom_call.1} parent=11 // pred_check
          _
        $region44: #{tpu_custom_call.1} parent=11 // pred_check_branch
          %111 = sbr.rel target = $region46
        $region45: #{tpu_custom_call.1} parent=11 // pred_region
          // Predicated region
          $region58: #{tpu_custom_call.1} parent=45 // pred_check
            _
          $region59: #{tpu_custom_call.1} parent=45 // pred_check_branch
            %127 = sbr.rel (0) target = $region61
          $region60: #{tpu_custom_call.1} parent=45 // pred_region
            %s129 = ssub.s32 2, 1
            loop: start=0, step=1, limit=1
            $region62: #{tpu_custom_call.1} parent=60 // loop_pre_header
              _
            $region63: #{tpu_custom_call.1} parent=60 // loop_header
              %s131 = sphi 0, %s135
              %p132 = scmp.ge.s32.totalorder %s131, 1
              %s136 = sphi %s108, %s108
              %s137 = sphi [#allocation3], [#allocation3]
            $region64: #{tpu_custom_call.1} parent=60 // loop_header_branch
              %134 = sbr.rel (%p132) target = $region68
            $region65: #{tpu_custom_call.1} parent=60 // loop_body
              %v138 = vld [vmem:[%s136] sm:%s129]
              %139 = vst [vmem:[%s137] sm:%s129] %v138
            $region66: #{tpu_custom_call.1} parent=60 // loop_footer
              %s135 = sadd.s32 1, %s131
            $region67: #{tpu_custom_call.1} parent=60 // loop_footer_branch
              %130 = sbr.rel target = $region63
            $region68: #{tpu_custom_call.1} parent=60 // loop_exit
              _
          $region61: #{tpu_custom_call.1} parent=45 // pred_fallthru
            _
        $region46: #{tpu_custom_call.1} parent=11 // pred_fallthru
          _
        // Predicated region
        $region47: #{tpu_custom_call.1} parent=11 // pred_check
          _
        $region48: #{tpu_custom_call.1} parent=11 // pred_check_branch
          %113 = sbr.rel (0) target = $region50
        $region49: #{tpu_custom_call.1} parent=11 // pred_region
          %s115 = ssub.s32 2, 1
          loop: start=0, step=1, limit=1
          $region51: #{tpu_custom_call.1} parent=49 // loop_pre_header
            _
          $region52: #{tpu_custom_call.1} parent=49 // loop_header
            %s117 = sphi 0, %s121
            %p118 = scmp.ge.s32.totalorder %s117, 1
            %s122 = sphi %s108, %s108
            %s123 = sphi [#allocation3], [#allocation3]
          $region53: #{tpu_custom_call.1} parent=49 // loop_header_branch
            %120 = sbr.rel (%p118) target = $region57
          $region54: #{tpu_custom_call.1} parent=49 // loop_body
            %v124 = vld [vmem:[%s122] sm:%s115]
            %125 = vst [vmem:[%s123] sm:%s115] %v124
          $region55: #{tpu_custom_call.1} parent=49 // loop_footer
            %s121 = sadd.s32 1, %s117
          $region56: #{tpu_custom_call.1} parent=49 // loop_footer_branch
            %116 = sbr.rel target = $region52
          $region57: #{tpu_custom_call.1} parent=49 // loop_exit
            _
        $region50: #{tpu_custom_call.1} parent=11 // pred_fallthru
          _
        // Predicated region
        $region69: #{tpu_custom_call.1} parent=11 // pred_check
          _
        $region70: #{tpu_custom_call.1} parent=11 // pred_check_branch
          %142 = sbr.rel (0) target = $region72
        $region71: #{tpu_custom_call.1} parent=11 // pred_region
          %143 = vsyncadd %s109, 16
        $region72: #{tpu_custom_call.1} parent=11 // pred_fallthru
          _
        %s144 = sadd.s32 %s62, 1
        %s145 = sld [smem:[#allocation6 + %s144]]
        %p146 = scmp.gt.s32.totalorder %s145, 0
        %s147 = scalar_select %p146, %s145, 0
        %p148 = scmp.lt.s32.totalorder %s147, 9
        %s149 = scalar_select %p148, %s147, 9
        %s150 = sld [smem:[#allocation7 + %s144]]
        %p151 = scmp.gt.s32.totalorder %s150, 0
        %s152 = scalar_select %p151, %s150, 0
        %p153 = scmp.lt.s32.totalorder %s152, 11
        %s154 = scalar_select %p153, %s152, 11
        %s155 = scalar_lea.vmem %s2, %s149
        %s156 = scalar_lea.vmem [#allocation2], 1
        %s157 = scalar_lea.sflag [#allocation4], 1
        // Predicated region
        $region73: #{tpu_custom_call.1} parent=11 // pred_check
          _
        $region74: #{tpu_custom_call.1} parent=11 // pred_check_branch
          %159 = sbr.rel target = $region76
        $region75: #{tpu_custom_call.1} parent=11 // pred_region
          // Predicated region
          $region88: #{tpu_custom_call.1} parent=75 // pred_check
            _
          $region89: #{tpu_custom_call.1} parent=75 // pred_check_branch
            %175 = sbr.rel (0) target = $region91
          $region90: #{tpu_custom_call.1} parent=75 // pred_region
            %s177 = ssub.s32 2, 1
            loop: start=0, step=1, limit=1
            $region92: #{tpu_custom_call.1} parent=90 // loop_pre_header
              _
            $region93: #{tpu_custom_call.1} parent=90 // loop_header
              %s179 = sphi 0, %s183
              %p180 = scmp.ge.s32.totalorder %s179, 1
              %s184 = sphi %s155, %s155
              %s185 = sphi %s156, %s156
            $region94: #{tpu_custom_call.1} parent=90 // loop_header_branch
              %182 = sbr.rel (%p180) target = $region98
            $region95: #{tpu_custom_call.1} parent=90 // loop_body
              %v186 = vld [vmem:[%s184] sm:%s177]
              %187 = vst [vmem:[%s185] sm:%s177] %v186
            $region96: #{tpu_custom_call.1} parent=90 // loop_footer
              %s183 = sadd.s32 1, %s179
            $region97: #{tpu_custom_call.1} parent=90 // loop_footer_branch
              %178 = sbr.rel target = $region93
            $region98: #{tpu_custom_call.1} parent=90 // loop_exit
              _
          $region91: #{tpu_custom_call.1} parent=75 // pred_fallthru
            _
        $region76: #{tpu_custom_call.1} parent=11 // pred_fallthru
          _
        // Predicated region
        $region77: #{tpu_custom_call.1} parent=11 // pred_check
          _
        $region78: #{tpu_custom_call.1} parent=11 // pred_check_branch
          %161 = sbr.rel (0) target = $region80
        $region79: #{tpu_custom_call.1} parent=11 // pred_region
          %s163 = ssub.s32 2, 1
          loop: start=0, step=1, limit=1
          $region81: #{tpu_custom_call.1} parent=79 // loop_pre_header
            _
          $region82: #{tpu_custom_call.1} parent=79 // loop_header
            %s165 = sphi 0, %s169
            %p166 = scmp.ge.s32.totalorder %s165, 1
            %s170 = sphi %s155, %s155
            %s171 = sphi %s156, %s156
          $region83: #{tpu_custom_call.1} parent=79 // loop_header_branch
            %168 = sbr.rel (%p166) target = $region87
          $region84: #{tpu_custom_call.1} parent=79 // loop_body
            %v172 = vld [vmem:[%s170] sm:%s163]
            %173 = vst [vmem:[%s171] sm:%s163] %v172
          $region85: #{tpu_custom_call.1} parent=79 // loop_footer
            %s169 = sadd.s32 1, %s165
          $region86: #{tpu_custom_call.1} parent=79 // loop_footer_branch
            %164 = sbr.rel target = $region82
          $region87: #{tpu_custom_call.1} parent=79 // loop_exit
            _
        $region80: #{tpu_custom_call.1} parent=11 // pred_fallthru
          _
        // Predicated region
        $region99: #{tpu_custom_call.1} parent=11 // pred_check
          _
        $region100: #{tpu_custom_call.1} parent=11 // pred_check_branch
          %190 = sbr.rel (0) target = $region102
        $region101: #{tpu_custom_call.1} parent=11 // pred_region
          %191 = vsyncadd %s157, 16
        $region102: #{tpu_custom_call.1} parent=11 // pred_fallthru
          _
        %s192 = scalar_lea.vmem %s3, %s154
        %s193 = scalar_lea.vmem [#allocation3], 1
        %s194 = scalar_lea.sflag [#allocation4], 9
        // Predicated region
        $region103: #{tpu_custom_call.1} parent=11 // pred_check
          _
        $region104: #{tpu_custom_call.1} parent=11 // pred_check_branch
          %196 = sbr.rel target = $region106
        $region105: #{tpu_custom_call.1} parent=11 // pred_region
          // Predicated region
          $region118: #{tpu_custom_call.1} parent=105 // pred_check
            _
          $region119: #{tpu_custom_call.1} parent=105 // pred_check_branch
            %212 = sbr.rel (0) target = $region121
          $region120: #{tpu_custom_call.1} parent=105 // pred_region
            %s214 = ssub.s32 2, 1
            loop: start=0, step=1, limit=1
            $region122: #{tpu_custom_call.1} parent=120 // loop_pre_header
              _
            $region123: #{tpu_custom_call.1} parent=120 // loop_header
              %s216 = sphi 0, %s220
              %p217 = scmp.ge.s32.totalorder %s216, 1
              %s221 = sphi %s192, %s192
              %s222 = sphi %s193, %s193
            $region124: #{tpu_custom_call.1} parent=120 // loop_header_branch
              %219 = sbr.rel (%p217) target = $region128
            $region125: #{tpu_custom_call.1} parent=120 // loop_body
              %v223 = vld [vmem:[%s221] sm:%s214]
              %224 = vst [vmem:[%s222] sm:%s214] %v223
            $region126: #{tpu_custom_call.1} parent=120 // loop_footer
              %s220 = sadd.s32 1, %s216
            $region127: #{tpu_custom_call.1} parent=120 // loop_footer_branch
              %215 = sbr.rel target = $region123
            $region128: #{tpu_custom_call.1} parent=120 // loop_exit
              _
          $region121: #{tpu_custom_call.1} parent=105 // pred_fallthru
            _
        $region106: #{tpu_custom_call.1} parent=11 // pred_fallthru
          _
        // Predicated region
        $region107: #{tpu_custom_call.1} parent=11 // pred_check
          _
        $region108: #{tpu_custom_call.1} parent=11 // pred_check_branch
          %198 = sbr.rel (0) target = $region110
        $region109: #{tpu_custom_call.1} parent=11 // pred_region
          %s200 = ssub.s32 2, 1
          loop: start=0, step=1, limit=1
          $region111: #{tpu_custom_call.1} parent=109 // loop_pre_header
            _
          $region112: #{tpu_custom_call.1} parent=109 // loop_header
            %s202 = sphi 0, %s206
            %p203 = scmp.ge.s32.totalorder %s202, 1
            %s207 = sphi %s192, %s192
            %s208 = sphi %s193, %s193
          $region113: #{tpu_custom_call.1} parent=109 // loop_header_branch
            %205 = sbr.rel (%p203) target = $region117
          $region114: #{tpu_custom_call.1} parent=109 // loop_body
            %v209 = vld [vmem:[%s207] sm:%s200]
            %210 = vst [vmem:[%s208] sm:%s200] %v209
          $region115: #{tpu_custom_call.1} parent=109 // loop_footer
            %s206 = sadd.s32 1, %s202
          $region116: #{tpu_custom_call.1} parent=109 // loop_footer_branch
            %201 = sbr.rel target = $region112
          $region117: #{tpu_custom_call.1} parent=109 // loop_exit
            _
        $region110: #{tpu_custom_call.1} parent=11 // pred_fallthru
          _
        // Predicated region
        $region129: #{tpu_custom_call.1} parent=11 // pred_check
          _
        $region130: #{tpu_custom_call.1} parent=11 // pred_check_branch
          %227 = sbr.rel (0) target = $region132
        $region131: #{tpu_custom_call.1} parent=11 // pred_region
          %228 = vsyncadd %s194, 16
        $region132: #{tpu_custom_call.1} parent=11 // pred_fallthru
          _
        %s229 = sadd.s32 %s62, 2
        %s230 = sld [smem:[#allocation6 + %s229]]
        %p231 = scmp.gt.s32.totalorder %s230, 0
        %s232 = scalar_select %p231, %s230, 0
        %p233 = scmp.lt.s32.totalorder %s232, 9
        %s234 = scalar_select %p233, %s232, 9
        %s235 = sld [smem:[#allocation7 + %s229]]
        %p236 = scmp.gt.s32.totalorder %s235, 0
        %s237 = scalar_select %p236, %s235, 0
        %p238 = scmp.lt.s32.totalorder %s237, 11
        %s239 = scalar_select %p238, %s237, 11
        %s240 = scalar_lea.vmem %s2, %s234
        %s241 = scalar_lea.vmem [#allocation2], 2
        %s242 = scalar_lea.sflag [#allocation4], 2
        // Predicated region
        $region133: #{tpu_custom_call.1} parent=11 // pred_check
          _
        $region134: #{tpu_custom_call.1} parent=11 // pred_check_branch
          %244 = sbr.rel target = $region136
        $region135: #{tpu_custom_call.1} parent=11 // pred_region
          // Predicated region
          $region148: #{tpu_custom_call.1} parent=135 // pred_check
            _
          $region149: #{tpu_custom_call.1} parent=135 // pred_check_branch
            %260 = sbr.rel (0) target = $region151
          $region150: #{tpu_custom_call.1} parent=135 // pred_region
            %s262 = ssub.s32 2, 1
            loop: start=0, step=1, limit=1
            $region152: #{tpu_custom_call.1} parent=150 // loop_pre_header
              _
            $region153: #{tpu_custom_call.1} parent=150 // loop_header
              %s264 = sphi 0, %s268
              %p265 = scmp.ge.s32.totalorder %s264, 1
              %s269 = sphi %s240, %s240
              %s270 = sphi %s241, %s241
            $region154: #{tpu_custom_call.1} parent=150 // loop_header_branch
              %267 = sbr.rel (%p265) target = $region158
            $region155: #{tpu_custom_call.1} parent=150 // loop_body
              %v271 = vld [vmem:[%s269] sm:%s262]
              %272 = vst [vmem:[%s270] sm:%s262] %v271
            $region156: #{tpu_custom_call.1} parent=150 // loop_footer
              %s268 = sadd.s32 1, %s264
            $region157: #{tpu_custom_call.1} parent=150 // loop_footer_branch
              %263 = sbr.rel target = $region153
            $region158: #{tpu_custom_call.1} parent=150 // loop_exit
              _
          $region151: #{tpu_custom_call.1} parent=135 // pred_fallthru
            _
        $region136: #{tpu_custom_call.1} parent=11 // pred_fallthru
          _
        // Predicated region
        $region137: #{tpu_custom_call.1} parent=11 // pred_check
          _
        $region138: #{tpu_custom_call.1} parent=11 // pred_check_branch
          %246 = sbr.rel (0) target = $region140
        $region139: #{tpu_custom_call.1} parent=11 // pred_region
          %s248 = ssub.s32 2, 1
          loop: start=0, step=1, limit=1
          $region141: #{tpu_custom_call.1} parent=139 // loop_pre_header
            _
          $region142: #{tpu_custom_call.1} parent=139 // loop_header
            %s250 = sphi 0, %s254
            %p251 = scmp.ge.s32.totalorder %s250, 1
            %s255 = sphi %s240, %s240
            %s256 = sphi %s241, %s241
          $region143: #{tpu_custom_call.1} parent=139 // loop_header_branch
            %253 = sbr.rel (%p251) target = $region147
          $region144: #{tpu_custom_call.1} parent=139 // loop_body
            %v257 = vld [vmem:[%s255] sm:%s248]
            %258 = vst [vmem:[%s256] sm:%s248] %v257
          $region145: #{tpu_custom_call.1} parent=139 // loop_footer
            %s254 = sadd.s32 1, %s250
          $region146: #{tpu_custom_call.1} parent=139 // loop_footer_branch
            %249 = sbr.rel target = $region142
          $region147: #{tpu_custom_call.1} parent=139 // loop_exit
            _
        $region140: #{tpu_custom_call.1} parent=11 // pred_fallthru
          _
        // Predicated region
        $region159: #{tpu_custom_call.1} parent=11 // pred_check
          _
        $region160: #{tpu_custom_call.1} parent=11 // pred_check_branch
          %275 = sbr.rel (0) target = $region162
        $region161: #{tpu_custom_call.1} parent=11 // pred_region
          %276 = vsyncadd %s242, 16
        $region162: #{tpu_custom_call.1} parent=11 // pred_fallthru
          _
        %s277 = scalar_lea.vmem %s3, %s239
        %s278 = scalar_lea.vmem [#allocation3], 2
        %s279 = scalar_lea.sflag [#allocation4], 10
        // Predicated region
        $region163: #{tpu_custom_call.1} parent=11 // pred_check
          _
        $region164: #{tpu_custom_call.1} parent=11 // pred_check_branch
          %281 = sbr.rel target = $region166
        $region165: #{tpu_custom_call.1} parent=11 // pred_region
          // Predicated region
          $region178: #{tpu_custom_call.1} parent=165 // pred_check
            _
          $region179: #{tpu_custom_call.1} parent=165 // pred_check_branch
            %297 = sbr.rel (0) target = $region181
          $region180: #{tpu_custom_call.1} parent=165 // pred_region
            %s299 = ssub.s32 2, 1
            loop: start=0, step=1, limit=1
            $region182: #{tpu_custom_call.1} parent=180 // loop_pre_header
              _
            $region183: #{tpu_custom_call.1} parent=180 // loop_header
              %s301 = sphi 0, %s305
              %p302 = scmp.ge.s32.totalorder %s301, 1
              %s306 = sphi %s277, %s277
              %s307 = sphi %s278, %s278
            $region184: #{tpu_custom_call.1} parent=180 // loop_header_branch
              %304 = sbr.rel (%p302) target = $region188
            $region185: #{tpu_custom_call.1} parent=180 // loop_body
              %v308 = vld [vmem:[%s306] sm:%s299]
              %309 = vst [vmem:[%s307] sm:%s299] %v308
            $region186: #{tpu_custom_call.1} parent=180 // loop_footer
              %s305 = sadd.s32 1, %s301
            $region187: #{tpu_custom_call.1} parent=180 // loop_footer_branch
              %300 = sbr.rel target = $region183
            $region188: #{tpu_custom_call.1} parent=180 // loop_exit
              _
          $region181: #{tpu_custom_call.1} parent=165 // pred_fallthru
            _
        $region166: #{tpu_custom_call.1} parent=11 // pred_fallthru
          _
        // Predicated region
        $region167: #{tpu_custom_call.1} parent=11 // pred_check
          _
        $region168: #{tpu_custom_call.1} parent=11 // pred_check_branch
          %283 = sbr.rel (0) target = $region170
        $region169: #{tpu_custom_call.1} parent=11 // pred_region
          %s285 = ssub.s32 2, 1
          loop: start=0, step=1, limit=1
          $region171: #{tpu_custom_call.1} parent=169 // loop_pre_header
            _
          $region172: #{tpu_custom_call.1} parent=169 // loop_header
            %s287 = sphi 0, %s291
            %p288 = scmp.ge.s32.totalorder %s287, 1
            %s292 = sphi %s277, %s277
            %s293 = sphi %s278, %s278
          $region173: #{tpu_custom_call.1} parent=169 // loop_header_branch
            %290 = sbr.rel (%p288) target = $region177
          $region174: #{tpu_custom_call.1} parent=169 // loop_body
            %v294 = vld [vmem:[%s292] sm:%s285]
            %295 = vst [vmem:[%s293] sm:%s285] %v294
          $region175: #{tpu_custom_call.1} parent=169 // loop_footer
            %s291 = sadd.s32 1, %s287
          $region176: #{tpu_custom_call.1} parent=169 // loop_footer_branch
            %286 = sbr.rel target = $region172
          $region177: #{tpu_custom_call.1} parent=169 // loop_exit
            _
        $region170: #{tpu_custom_call.1} parent=11 // pred_fallthru
          _
        // Predicated region
        $region189: #{tpu_custom_call.1} parent=11 // pred_check
          _
        $region190: #{tpu_custom_call.1} parent=11 // pred_check_branch
          %312 = sbr.rel (0) target = $region192
        $region191: #{tpu_custom_call.1} parent=11 // pred_region
          %313 = vsyncadd %s279, 16
        $region192: #{tpu_custom_call.1} parent=11 // pred_fallthru
          _
        %s314 = sadd.s32 %s62, 3
        %s315 = sld [smem:[#allocation6 + %s314]]
        %p316 = scmp.gt.s32.totalorder %s315, 0
        %s317 = scalar_select %p316, %s315, 0
        %p318 = scmp.lt.s32.totalorder %s317, 9
        %s319 = scalar_select %p318, %s317, 9
        %s320 = sld [smem:[#allocation7 + %s314]]
        %p321 = scmp.gt.s32.totalorder %s320, 0
        %s322 = scalar_select %p321, %s320, 0
        %p323 = scmp.lt.s32.totalorder %s322, 11
        %s324 = scalar_select %p323, %s322, 11
        %s325 = scalar_lea.vmem %s2, %s319
        %s326 = scalar_lea.vmem [#allocation2], 3
        %s327 = scalar_lea.sflag [#allocation4], 3
        // Predicated region
        $region193: #{tpu_custom_call.1} parent=11 // pred_check
          _
        $region194: #{tpu_custom_call.1} parent=11 // pred_check_branch
          %329 = sbr.rel target = $region196
        $region195: #{tpu_custom_call.1} parent=11 // pred_region
          // Predicated region
          $region208: #{tpu_custom_call.1} parent=195 // pred_check
            _
          $region209: #{tpu_custom_call.1} parent=195 // pred_check_branch
            %345 = sbr.rel (0) target = $region211
          $region210: #{tpu_custom_call.1} parent=195 // pred_region
            %s347 = ssub.s32 2, 1
            loop: start=0, step=1, limit=1
            $region212: #{tpu_custom_call.1} parent=210 // loop_pre_header
              _
            $region213: #{tpu_custom_call.1} parent=210 // loop_header
              %s349 = sphi 0, %s353
              %p350 = scmp.ge.s32.totalorder %s349, 1
              %s354 = sphi %s325, %s325
              %s355 = sphi %s326, %s326
            $region214: #{tpu_custom_call.1} parent=210 // loop_header_branch
              %352 = sbr.rel (%p350) target = $region218
            $region215: #{tpu_custom_call.1} parent=210 // loop_body
              %v356 = vld [vmem:[%s354] sm:%s347]
              %357 = vst [vmem:[%s355] sm:%s347] %v356
            $region216: #{tpu_custom_call.1} parent=210 // loop_footer
              %s353 = sadd.s32 1, %s349
            $region217: #{tpu_custom_call.1} parent=210 // loop_footer_branch
              %348 = sbr.rel target = $region213
            $region218: #{tpu_custom_call.1} parent=210 // loop_exit
              _
          $region211: #{tpu_custom_call.1} parent=195 // pred_fallthru
            _
        $region196: #{tpu_custom_call.1} parent=11 // pred_fallthru
          _
        // Predicated region
        $region197: #{tpu_custom_call.1} parent=11 // pred_check
          _
        $region198: #{tpu_custom_call.1} parent=11 // pred_check_branch
          %331 = sbr.rel (0) target = $region200
        $region199: #{tpu_custom_call.1} parent=11 // pred_region
          %s333 = ssub.s32 2, 1
          loop: start=0, step=1, limit=1
          $region201: #{tpu_custom_call.1} parent=199 // loop_pre_header
            _
          $region202: #{tpu_custom_call.1} parent=199 // loop_header
            %s335 = sphi 0, %s339
            %p336 = scmp.ge.s32.totalorder %s335, 1
            %s340 = sphi %s325, %s325
            %s341 = sphi %s326, %s326
          $region203: #{tpu_custom_call.1} parent=199 // loop_header_branch
            %338 = sbr.rel (%p336) target = $region207
          $region204: #{tpu_custom_call.1} parent=199 // loop_body
            %v342 = vld [vmem:[%s340] sm:%s333]
            %343 = vst [vmem:[%s341] sm:%s333] %v342
          $region205: #{tpu_custom_call.1} parent=199 // loop_footer
            %s339 = sadd.s32 1, %s335
          $region206: #{tpu_custom_call.1} parent=199 // loop_footer_branch
            %334 = sbr.rel target = $region202
          $region207: #{tpu_custom_call.1} parent=199 // loop_exit
            _
        $region200: #{tpu_custom_call.1} parent=11 // pred_fallthru
          _
        // Predicated region
        $region219: #{tpu_custom_call.1} parent=11 // pred_check
          _
        $region220: #{tpu_custom_call.1} parent=11 // pred_check_branch
          %360 = sbr.rel (0) target = $region222
        $region221: #{tpu_custom_call.1} parent=11 // pred_region
          %361 = vsyncadd %s327, 16
        $region222: #{tpu_custom_call.1} parent=11 // pred_fallthru
          _
        %s362 = scalar_lea.vmem %s3, %s324
        %s363 = scalar_lea.vmem [#allocation3], 3
        %s364 = scalar_lea.sflag [#allocation4], 11
        // Predicated region
        $region223: #{tpu_custom_call.1} parent=11 // pred_check
          _
        $region224: #{tpu_custom_call.1} parent=11 // pred_check_branch
          %366 = sbr.rel target = $region226
        $region225: #{tpu_custom_call.1} parent=11 // pred_region
          // Predicated region
          $region238: #{tpu_custom_call.1} parent=225 // pred_check
            _
          $region239: #{tpu_custom_call.1} parent=225 // pred_check_branch
            %382 = sbr.rel (0) target = $region241
          $region240: #{tpu_custom_call.1} parent=225 // pred_region
            %s384 = ssub.s32 2, 1
            loop: start=0, step=1, limit=1
            $region242: #{tpu_custom_call.1} parent=240 // loop_pre_header
              _
            $region243: #{tpu_custom_call.1} parent=240 // loop_header
              %s386 = sphi 0, %s390
              %p387 = scmp.ge.s32.totalorder %s386, 1
              %s391 = sphi %s362, %s362
              %s392 = sphi %s363, %s363
            $region244: #{tpu_custom_call.1} parent=240 // loop_header_branch
              %389 = sbr.rel (%p387) target = $region248
            $region245: #{tpu_custom_call.1} parent=240 // loop_body
              %v393 = vld [vmem:[%s391] sm:%s384]
              %394 = vst [vmem:[%s392] sm:%s384] %v393
            $region246: #{tpu_custom_call.1} parent=240 // loop_footer
              %s390 = sadd.s32 1, %s386
            $region247: #{tpu_custom_call.1} parent=240 // loop_footer_branch
              %385 = sbr.rel target = $region243
            $region248: #{tpu_custom_call.1} parent=240 // loop_exit
              _
          $region241: #{tpu_custom_call.1} parent=225 // pred_fallthru
            _
        $region226: #{tpu_custom_call.1} parent=11 // pred_fallthru
          _
        // Predicated region
        $region227: #{tpu_custom_call.1} parent=11 // pred_check
          _
        $region228: #{tpu_custom_call.1} parent=11 // pred_check_branch
          %368 = sbr.rel (0) target = $region230
        $region229: #{tpu_custom_call.1} parent=11 // pred_region
          %s370 = ssub.s32 2, 1
          loop: start=0, step=1, limit=1
          $region231: #{tpu_custom_call.1} parent=229 // loop_pre_header
            _
          $region232: #{tpu_custom_call.1} parent=229 // loop_header
            %s372 = sphi 0, %s376
            %p373 = scmp.ge.s32.totalorder %s372, 1
            %s377 = sphi %s362, %s362
            %s378 = sphi %s363, %s363
          $region233: #{tpu_custom_call.1} parent=229 // loop_header_branch
            %375 = sbr.rel (%p373) target = $region237
          $region234: #{tpu_custom_call.1} parent=229 // loop_body
            %v379 = vld [vmem:[%s377] sm:%s370]
            %380 = vst [vmem:[%s378] sm:%s370] %v379
          $region235: #{tpu_custom_call.1} parent=229 // loop_footer
            %s376 = sadd.s32 1, %s372
          $region236: #{tpu_custom_call.1} parent=229 // loop_footer_branch
            %371 = sbr.rel target = $region232
          $region237: #{tpu_custom_call.1} parent=229 // loop_exit
            _
        $region230: #{tpu_custom_call.1} parent=11 // pred_fallthru
          _
        // Predicated region
        $region249: #{tpu_custom_call.1} parent=11 // pred_check
          _
        $region250: #{tpu_custom_call.1} parent=11 // pred_check_branch
          %397 = sbr.rel (0) target = $region252
        $region251: #{tpu_custom_call.1} parent=11 // pred_region
          %398 = vsyncadd %s364, 16
        $region252: #{tpu_custom_call.1} parent=11 // pred_fallthru
          _
        %s399 = sadd.s32 %s62, 4
        %s400 = sld [smem:[#allocation6 + %s399]]
        %p401 = scmp.gt.s32.totalorder %s400, 0
        %s402 = scalar_select %p401, %s400, 0
        %p403 = scmp.lt.s32.totalorder %s402, 9
        %s404 = scalar_select %p403, %s402, 9
        %s405 = sld [smem:[#allocation7 + %s399]]
        %p406 = scmp.gt.s32.totalorder %s405, 0
        %s407 = scalar_select %p406, %s405, 0
        %p408 = scmp.lt.s32.totalorder %s407, 11
        %s409 = scalar_select %p408, %s407, 11
        %s410 = scalar_lea.vmem %s2, %s404
        %s411 = scalar_lea.vmem [#allocation2], 4
        %s412 = scalar_lea.sflag [#allocation4], 4
        // Predicated region
        $region253: #{tpu_custom_call.1} parent=11 // pred_check
          _
        $region254: #{tpu_custom_call.1} parent=11 // pred_check_branch
          %414 = sbr.rel target = $region256
        $region255: #{tpu_custom_call.1} parent=11 // pred_region
          // Predicated region
          $region268: #{tpu_custom_call.1} parent=255 // pred_check
            _
          $region269: #{tpu_custom_call.1} parent=255 // pred_check_branch
            %430 = sbr.rel (0) target = $region271
          $region270: #{tpu_custom_call.1} parent=255 // pred_region
            %s432 = ssub.s32 2, 1
            loop: start=0, step=1, limit=1
            $region272: #{tpu_custom_call.1} parent=270 // loop_pre_header
              _
            $region273: #{tpu_custom_call.1} parent=270 // loop_header
              %s434 = sphi 0, %s438
              %p435 = scmp.ge.s32.totalorder %s434, 1
              %s439 = sphi %s410, %s410
              %s440 = sphi %s411, %s411
            $region274: #{tpu_custom_call.1} parent=270 // loop_header_branch
              %437 = sbr.rel (%p435) target = $region278
            $region275: #{tpu_custom_call.1} parent=270 // loop_body
              %v441 = vld [vmem:[%s439] sm:%s432]
              %442 = vst [vmem:[%s440] sm:%s432] %v441
            $region276: #{tpu_custom_call.1} parent=270 // loop_footer
              %s438 = sadd.s32 1, %s434
            $region277: #{tpu_custom_call.1} parent=270 // loop_footer_branch
              %433 = sbr.rel target = $region273
            $region278: #{tpu_custom_call.1} parent=270 // loop_exit
              _
          $region271: #{tpu_custom_call.1} parent=255 // pred_fallthru
            _
        $region256: #{tpu_custom_call.1} parent=11 // pred_fallthru
          _
        // Predicated region
        $region257: #{tpu_custom_call.1} parent=11 // pred_check
          _
        $region258: #{tpu_custom_call.1} parent=11 // pred_check_branch
          %416 = sbr.rel (0) target = $region260
        $region259: #{tpu_custom_call.1} parent=11 // pred_region
          %s418 = ssub.s32 2, 1
          loop: start=0, step=1, limit=1
          $region261: #{tpu_custom_call.1} parent=259 // loop_pre_header
            _
          $region262: #{tpu_custom_call.1} parent=259 // loop_header
            %s420 = sphi 0, %s424
            %p421 = scmp.ge.s32.totalorder %s420, 1
            %s425 = sphi %s410, %s410
            %s426 = sphi %s411, %s411
          $region263: #{tpu_custom_call.1} parent=259 // loop_header_branch
            %423 = sbr.rel (%p421) target = $region267
          $region264: #{tpu_custom_call.1} parent=259 // loop_body
            %v427 = vld [vmem:[%s425] sm:%s418]
            %428 = vst [vmem:[%s426] sm:%s418] %v427
          $region265: #{tpu_custom_call.1} parent=259 // loop_footer
            %s424 = sadd.s32 1, %s420
          $region266: #{tpu_custom_call.1} parent=259 // loop_footer_branch
            %419 = sbr.rel target = $region262
          $region267: #{tpu_custom_call.1} parent=259 // loop_exit
            _
        $region260: #{tpu_custom_call.1} parent=11 // pred_fallthru
          _
        // Predicated region
        $region279: #{tpu_custom_call.1} parent=11 // pred_check
          _
        $region280: #{tpu_custom_call.1} parent=11 // pred_check_branch
          %445 = sbr.rel (0) target = $region282
        $region281: #{tpu_custom_call.1} parent=11 // pred_region
          %446 = vsyncadd %s412, 16
        $region282: #{tpu_custom_call.1} parent=11 // pred_fallthru
          _
        %s447 = scalar_lea.vmem %s3, %s409
        %s448 = scalar_lea.vmem [#allocation3], 4
        %s449 = scalar_lea.sflag [#allocation4], 12
        // Predicated region
        $region283: #{tpu_custom_call.1} parent=11 // pred_check
          _
        $region284: #{tpu_custom_call.1} parent=11 // pred_check_branch
          %451 = sbr.rel target = $region286
        $region285: #{tpu_custom_call.1} parent=11 // pred_region
          // Predicated region
          $region298: #{tpu_custom_call.1} parent=285 // pred_check
            _
          $region299: #{tpu_custom_call.1} parent=285 // pred_check_branch
            %467 = sbr.rel (0) target = $region301
          $region300: #{tpu_custom_call.1} parent=285 // pred_region
            %s469 = ssub.s32 2, 1
            loop: start=0, step=1, limit=1
            $region302: #{tpu_custom_call.1} parent=300 // loop_pre_header
              _
            $region303: #{tpu_custom_call.1} parent=300 // loop_header
              %s471 = sphi 0, %s475
              %p472 = scmp.ge.s32.totalorder %s471, 1
              %s476 = sphi %s447, %s447
              %s477 = sphi %s448, %s448
            $region304: #{tpu_custom_call.1} parent=300 // loop_header_branch
              %474 = sbr.rel (%p472) target = $region308
            $region305: #{tpu_custom_call.1} parent=300 // loop_body
              %v478 = vld [vmem:[%s476] sm:%s469]
              %479 = vst [vmem:[%s477] sm:%s469] %v478
            $region306: #{tpu_custom_call.1} parent=300 // loop_footer
              %s475 = sadd.s32 1, %s471
            $region307: #{tpu_custom_call.1} parent=300 // loop_footer_branch
              %470 = sbr.rel target = $region303
            $region308: #{tpu_custom_call.1} parent=300 // loop_exit
              _
          $region301: #{tpu_custom_call.1} parent=285 // pred_fallthru
            _
        $region286: #{tpu_custom_call.1} parent=11 // pred_fallthru
          _
        // Predicated region
        $region287: #{tpu_custom_call.1} parent=11 // pred_check
          _
        $region288: #{tpu_custom_call.1} parent=11 // pred_check_branch
          %453 = sbr.rel (0) target = $region290
        $region289: #{tpu_custom_call.1} parent=11 // pred_region
          %s455 = ssub.s32 2, 1
          loop: start=0, step=1, limit=1
          $region291: #{tpu_custom_call.1} parent=289 // loop_pre_header
            _
          $region292: #{tpu_custom_call.1} parent=289 // loop_header
            %s457 = sphi 0, %s461
            %p458 = scmp.ge.s32.totalorder %s457, 1
            %s462 = sphi %s447, %s447
            %s463 = sphi %s448, %s448
          $region293: #{tpu_custom_call.1} parent=289 // loop_header_branch
            %460 = sbr.rel (%p458) target = $region297
          $region294: #{tpu_custom_call.1} parent=289 // loop_body
            %v464 = vld [vmem:[%s462] sm:%s455]
            %465 = vst [vmem:[%s463] sm:%s455] %v464
          $region295: #{tpu_custom_call.1} parent=289 // loop_footer
            %s461 = sadd.s32 1, %s457
          $region296: #{tpu_custom_call.1} parent=289 // loop_footer_branch
            %456 = sbr.rel target = $region292
          $region297: #{tpu_custom_call.1} parent=289 // loop_exit
            _
        $region290: #{tpu_custom_call.1} parent=11 // pred_fallthru
          _
        // Predicated region
        $region309: #{tpu_custom_call.1} parent=11 // pred_check
          _
        $region310: #{tpu_custom_call.1} parent=11 // pred_check_branch
          %482 = sbr.rel (0) target = $region312
        $region311: #{tpu_custom_call.1} parent=11 // pred_region
          %483 = vsyncadd %s449, 16
        $region312: #{tpu_custom_call.1} parent=11 // pred_fallthru
          _
        %s484 = sadd.s32 %s62, 5
        %s485 = sld [smem:[#allocation6 + %s484]]
        %p486 = scmp.gt.s32.totalorder %s485, 0
        %s487 = scalar_select %p486, %s485, 0
        %p488 = scmp.lt.s32.totalorder %s487, 9
        %s489 = scalar_select %p488, %s487, 9
        %s490 = sld [smem:[#allocation7 + %s484]]
        %p491 = scmp.gt.s32.totalorder %s490, 0
        %s492 = scalar_select %p491, %s490, 0
        %p493 = scmp.lt.s32.totalorder %s492, 11
        %s494 = scalar_select %p493, %s492, 11
        %s495 = scalar_lea.vmem %s2, %s489
        %s496 = scalar_lea.vmem [#allocation2], 5
        %s497 = scalar_lea.sflag [#allocation4], 5
        // Predicated region
        $region313: #{tpu_custom_call.1} parent=11 // pred_check
          _
        $region314: #{tpu_custom_call.1} parent=11 // pred_check_branch
          %499 = sbr.rel target = $region316
        $region315: #{tpu_custom_call.1} parent=11 // pred_region
          // Predicated region
          $region328: #{tpu_custom_call.1} parent=315 // pred_check
            _
          $region329: #{tpu_custom_call.1} parent=315 // pred_check_branch
            %515 = sbr.rel (0) target = $region331
          $region330: #{tpu_custom_call.1} parent=315 // pred_region
            %s517 = ssub.s32 2, 1
            loop: start=0, step=1, limit=1
            $region332: #{tpu_custom_call.1} parent=330 // loop_pre_header
              _
            $region333: #{tpu_custom_call.1} parent=330 // loop_header
              %s519 = sphi 0, %s523
              %p520 = scmp.ge.s32.totalorder %s519, 1
              %s524 = sphi %s495, %s495
              %s525 = sphi %s496, %s496
            $region334: #{tpu_custom_call.1} parent=330 // loop_header_branch
              %522 = sbr.rel (%p520) target = $region338
            $region335: #{tpu_custom_call.1} parent=330 // loop_body
              %v526 = vld [vmem:[%s524] sm:%s517]
              %527 = vst [vmem:[%s525] sm:%s517] %v526
            $region336: #{tpu_custom_call.1} parent=330 // loop_footer
              %s523 = sadd.s32 1, %s519
            $region337: #{tpu_custom_call.1} parent=330 // loop_footer_branch
              %518 = sbr.rel target = $region333
            $region338: #{tpu_custom_call.1} parent=330 // loop_exit
              _
          $region331: #{tpu_custom_call.1} parent=315 // pred_fallthru
            _
        $region316: #{tpu_custom_call.1} parent=11 // pred_fallthru
          _
        // Predicated region
        $region317: #{tpu_custom_call.1} parent=11 // pred_check
          _
        $region318: #{tpu_custom_call.1} parent=11 // pred_check_branch
          %501 = sbr.rel (0) target = $region320
        $region319: #{tpu_custom_call.1} parent=11 // pred_region
          %s503 = ssub.s32 2, 1
          loop: start=0, step=1, limit=1
          $region321: #{tpu_custom_call.1} parent=319 // loop_pre_header
            _
          $region322: #{tpu_custom_call.1} parent=319 // loop_header
            %s505 = sphi 0, %s509
            %p506 = scmp.ge.s32.totalorder %s505, 1
            %s510 = sphi %s495, %s495
            %s511 = sphi %s496, %s496
          $region323: #{tpu_custom_call.1} parent=319 // loop_header_branch
            %508 = sbr.rel (%p506) target = $region327
          $region324: #{tpu_custom_call.1} parent=319 // loop_body
            %v512 = vld [vmem:[%s510] sm:%s503]
            %513 = vst [vmem:[%s511] sm:%s503] %v512
          $region325: #{tpu_custom_call.1} parent=319 // loop_footer
            %s509 = sadd.s32 1, %s505
          $region326: #{tpu_custom_call.1} parent=319 // loop_footer_branch
            %504 = sbr.rel target = $region322
          $region327: #{tpu_custom_call.1} parent=319 // loop_exit
            _
        $region320: #{tpu_custom_call.1} parent=11 // pred_fallthru
          _
        // Predicated region
        $region339: #{tpu_custom_call.1} parent=11 // pred_check
          _
        $region340: #{tpu_custom_call.1} parent=11 // pred_check_branch
          %530 = sbr.rel (0) target = $region342
        $region341: #{tpu_custom_call.1} parent=11 // pred_region
          %531 = vsyncadd %s497, 16
        $region342: #{tpu_custom_call.1} parent=11 // pred_fallthru
          _
        %s532 = scalar_lea.vmem %s3, %s494
        %s533 = scalar_lea.vmem [#allocation3], 5
        %s534 = scalar_lea.sflag [#allocation4], 13
        // Predicated region
        $region343: #{tpu_custom_call.1} parent=11 // pred_check
          _
        $region344: #{tpu_custom_call.1} parent=11 // pred_check_branch
          %536 = sbr.rel target = $region346
        $region345: #{tpu_custom_call.1} parent=11 // pred_region
          // Predicated region
          $region358: #{tpu_custom_call.1} parent=345 // pred_check
            _
          $region359: #{tpu_custom_call.1} parent=345 // pred_check_branch
            %552 = sbr.rel (0) target = $region361
          $region360: #{tpu_custom_call.1} parent=345 // pred_region
            %s554 = ssub.s32 2, 1
            loop: start=0, step=1, limit=1
            $region362: #{tpu_custom_call.1} parent=360 // loop_pre_header
              _
            $region363: #{tpu_custom_call.1} parent=360 // loop_header
              %s556 = sphi 0, %s560
              %p557 = scmp.ge.s32.totalorder %s556, 1
              %s561 = sphi %s532, %s532
              %s562 = sphi %s533, %s533
            $region364: #{tpu_custom_call.1} parent=360 // loop_header_branch
              %559 = sbr.rel (%p557) target = $region368
            $region365: #{tpu_custom_call.1} parent=360 // loop_body
              %v563 = vld [vmem:[%s561] sm:%s554]
              %564 = vst [vmem:[%s562] sm:%s554] %v563
            $region366: #{tpu_custom_call.1} parent=360 // loop_footer
              %s560 = sadd.s32 1, %s556
            $region367: #{tpu_custom_call.1} parent=360 // loop_footer_branch
              %555 = sbr.rel target = $region363
            $region368: #{tpu_custom_call.1} parent=360 // loop_exit
              _
          $region361: #{tpu_custom_call.1} parent=345 // pred_fallthru
            _
        $region346: #{tpu_custom_call.1} parent=11 // pred_fallthru
          _
        // Predicated region
        $region347: #{tpu_custom_call.1} parent=11 // pred_check
          _
        $region348: #{tpu_custom_call.1} parent=11 // pred_check_branch
          %538 = sbr.rel (0) target = $region350
        $region349: #{tpu_custom_call.1} parent=11 // pred_region
          %s540 = ssub.s32 2, 1
          loop: start=0, step=1, limit=1
          $region351: #{tpu_custom_call.1} parent=349 // loop_pre_header
            _
          $region352: #{tpu_custom_call.1} parent=349 // loop_header
            %s542 = sphi 0, %s546
            %p543 = scmp.ge.s32.totalorder %s542, 1
            %s547 = sphi %s532, %s532
            %s548 = sphi %s533, %s533
          $region353: #{tpu_custom_call.1} parent=349 // loop_header_branch
            %545 = sbr.rel (%p543) target = $region357
          $region354: #{tpu_custom_call.1} parent=349 // loop_body
            %v549 = vld [vmem:[%s547] sm:%s540]
            %550 = vst [vmem:[%s548] sm:%s540] %v549
          $region355: #{tpu_custom_call.1} parent=349 // loop_footer
            %s546 = sadd.s32 1, %s542
          $region356: #{tpu_custom_call.1} parent=349 // loop_footer_branch
            %541 = sbr.rel target = $region352
          $region357: #{tpu_custom_call.1} parent=349 // loop_exit
            _
        $region350: #{tpu_custom_call.1} parent=11 // pred_fallthru
          _
        // Predicated region
        $region369: #{tpu_custom_call.1} parent=11 // pred_check
          _
        $region370: #{tpu_custom_call.1} parent=11 // pred_check_branch
          %567 = sbr.rel (0) target = $region372
        $region371: #{tpu_custom_call.1} parent=11 // pred_region
          %568 = vsyncadd %s534, 16
        $region372: #{tpu_custom_call.1} parent=11 // pred_fallthru
          _
        %s569 = sadd.s32 %s62, 6
        %s570 = sld [smem:[#allocation6 + %s569]]
        %p571 = scmp.gt.s32.totalorder %s570, 0
        %s572 = scalar_select %p571, %s570, 0
        %p573 = scmp.lt.s32.totalorder %s572, 9
        %s574 = scalar_select %p573, %s572, 9
        %s575 = sld [smem:[#allocation7 + %s569]]
        %p576 = scmp.gt.s32.totalorder %s575, 0
        %s577 = scalar_select %p576, %s575, 0
        %p578 = scmp.lt.s32.totalorder %s577, 11
        %s579 = scalar_select %p578, %s577, 11
        %s580 = scalar_lea.vmem %s2, %s574
        %s581 = scalar_lea.vmem [#allocation2], 6
        %s582 = scalar_lea.sflag [#allocation4], 6
        // Predicated region
        $region373: #{tpu_custom_call.1} parent=11 // pred_check
          _
        $region374: #{tpu_custom_call.1} parent=11 // pred_check_branch
          %584 = sbr.rel target = $region376
        $region375: #{tpu_custom_call.1} parent=11 // pred_region
          // Predicated region
          $region388: #{tpu_custom_call.1} parent=375 // pred_check
            _
          $region389: #{tpu_custom_call.1} parent=375 // pred_check_branch
            %600 = sbr.rel (0) target = $region391
          $region390: #{tpu_custom_call.1} parent=375 // pred_region
            %s602 = ssub.s32 2, 1
            loop: start=0, step=1, limit=1
            $region392: #{tpu_custom_call.1} parent=390 // loop_pre_header
              _
            $region393: #{tpu_custom_call.1} parent=390 // loop_header
              %s604 = sphi 0, %s608
              %p605 = scmp.ge.s32.totalorder %s604, 1
              %s609 = sphi %s580, %s580
              %s610 = sphi %s581, %s581
            $region394: #{tpu_custom_call.1} parent=390 // loop_header_branch
              %607 = sbr.rel (%p605) target = $region398
            $region395: #{tpu_custom_call.1} parent=390 // loop_body
              %v611 = vld [vmem:[%s609] sm:%s602]
              %612 = vst [vmem:[%s610] sm:%s602] %v611
            $region396: #{tpu_custom_call.1} parent=390 // loop_footer
              %s608 = sadd.s32 1, %s604
            $region397: #{tpu_custom_call.1} parent=390 // loop_footer_branch
              %603 = sbr.rel target = $region393
            $region398: #{tpu_custom_call.1} parent=390 // loop_exit
              _
          $region391: #{tpu_custom_call.1} parent=375 // pred_fallthru
            _
        $region376: #{tpu_custom_call.1} parent=11 // pred_fallthru
          _
        // Predicated region
        $region377: #{tpu_custom_call.1} parent=11 // pred_check
          _
        $region378: #{tpu_custom_call.1} parent=11 // pred_check_branch
          %586 = sbr.rel (0) target = $region380
        $region379: #{tpu_custom_call.1} parent=11 // pred_region
          %s588 = ssub.s32 2, 1
          loop: start=0, step=1, limit=1
          $region381: #{tpu_custom_call.1} parent=379 // loop_pre_header
            _
          $region382: #{tpu_custom_call.1} parent=379 // loop_header
            %s590 = sphi 0, %s594
            %p591 = scmp.ge.s32.totalorder %s590, 1
            %s595 = sphi %s580, %s580
            %s596 = sphi %s581, %s581
          $region383: #{tpu_custom_call.1} parent=379 // loop_header_branch
            %593 = sbr.rel (%p591) target = $region387
          $region384: #{tpu_custom_call.1} parent=379 // loop_body
            %v597 = vld [vmem:[%s595] sm:%s588]
            %598 = vst [vmem:[%s596] sm:%s588] %v597
          $region385: #{tpu_custom_call.1} parent=379 // loop_footer
            %s594 = sadd.s32 1, %s590
          $region386: #{tpu_custom_call.1} parent=379 // loop_footer_branch
            %589 = sbr.rel target = $region382
          $region387: #{tpu_custom_call.1} parent=379 // loop_exit
            _
        $region380: #{tpu_custom_call.1} parent=11 // pred_fallthru
          _
        // Predicated region
        $region399: #{tpu_custom_call.1} parent=11 // pred_check
          _
        $region400: #{tpu_custom_call.1} parent=11 // pred_check_branch
          %615 = sbr.rel (0) target = $region402
        $region401: #{tpu_custom_call.1} parent=11 // pred_region
          %616 = vsyncadd %s582, 16
        $region402: #{tpu_custom_call.1} parent=11 // pred_fallthru
          _
        %s617 = scalar_lea.vmem %s3, %s579
        %s618 = scalar_lea.vmem [#allocation3], 6
        %s619 = scalar_lea.sflag [#allocation4], 14
        // Predicated region
        $region403: #{tpu_custom_call.1} parent=11 // pred_check
          _
        $region404: #{tpu_custom_call.1} parent=11 // pred_check_branch
          %621 = sbr.rel target = $region406
        $region405: #{tpu_custom_call.1} parent=11 // pred_region
          // Predicated region
          $region418: #{tpu_custom_call.1} parent=405 // pred_check
            _
          $region419: #{tpu_custom_call.1} parent=405 // pred_check_branch
            %637 = sbr.rel (0) target = $region421
          $region420: #{tpu_custom_call.1} parent=405 // pred_region
            %s639 = ssub.s32 2, 1
            loop: start=0, step=1, limit=1
            $region422: #{tpu_custom_call.1} parent=420 // loop_pre_header
              _
            $region423: #{tpu_custom_call.1} parent=420 // loop_header
              %s641 = sphi 0, %s645
              %p642 = scmp.ge.s32.totalorder %s641, 1
              %s646 = sphi %s617, %s617
              %s647 = sphi %s618, %s618
            $region424: #{tpu_custom_call.1} parent=420 // loop_header_branch
              %644 = sbr.rel (%p642) target = $region428
            $region425: #{tpu_custom_call.1} parent=420 // loop_body
              %v648 = vld [vmem:[%s646] sm:%s639]
              %649 = vst [vmem:[%s647] sm:%s639] %v648
            $region426: #{tpu_custom_call.1} parent=420 // loop_footer
              %s645 = sadd.s32 1, %s641
            $region427: #{tpu_custom_call.1} parent=420 // loop_footer_branch
              %640 = sbr.rel target = $region423
            $region428: #{tpu_custom_call.1} parent=420 // loop_exit
              _
          $region421: #{tpu_custom_call.1} parent=405 // pred_fallthru
            _
        $region406: #{tpu_custom_call.1} parent=11 // pred_fallthru
          _
        // Predicated region
        $region407: #{tpu_custom_call.1} parent=11 // pred_check
          _
        $region408: #{tpu_custom_call.1} parent=11 // pred_check_branch
          %623 = sbr.rel (0) target = $region410
        $region409: #{tpu_custom_call.1} parent=11 // pred_region
          %s625 = ssub.s32 2, 1
          loop: start=0, step=1, limit=1
          $region411: #{tpu_custom_call.1} parent=409 // loop_pre_header
            _
          $region412: #{tpu_custom_call.1} parent=409 // loop_header
            %s627 = sphi 0, %s631
            %p628 = scmp.ge.s32.totalorder %s627, 1
            %s632 = sphi %s617, %s617
            %s633 = sphi %s618, %s618
          $region413: #{tpu_custom_call.1} parent=409 // loop_header_branch
            %630 = sbr.rel (%p628) target = $region417
          $region414: #{tpu_custom_call.1} parent=409 // loop_body
            %v634 = vld [vmem:[%s632] sm:%s625]
            %635 = vst [vmem:[%s633] sm:%s625] %v634
          $region415: #{tpu_custom_call.1} parent=409 // loop_footer
            %s631 = sadd.s32 1, %s627
          $region416: #{tpu_custom_call.1} parent=409 // loop_footer_branch
            %626 = sbr.rel target = $region412
          $region417: #{tpu_custom_call.1} parent=409 // loop_exit
            _
        $region410: #{tpu_custom_call.1} parent=11 // pred_fallthru
          _
        // Predicated region
        $region429: #{tpu_custom_call.1} parent=11 // pred_check
          _
        $region430: #{tpu_custom_call.1} parent=11 // pred_check_branch
          %652 = sbr.rel (0) target = $region432
        $region431: #{tpu_custom_call.1} parent=11 // pred_region
          %653 = vsyncadd %s619, 16
        $region432: #{tpu_custom_call.1} parent=11 // pred_fallthru
          _
        %s654 = sadd.s32 %s62, 7
        %s655 = sld [smem:[#allocation6 + %s654]]
        %p656 = scmp.gt.s32.totalorder %s655, 0
        %s657 = scalar_select %p656, %s655, 0
        %p658 = scmp.lt.s32.totalorder %s657, 9
        %s659 = scalar_select %p658, %s657, 9
        %s660 = sld [smem:[#allocation7 + %s654]]
        %p661 = scmp.gt.s32.totalorder %s660, 0
        %s662 = scalar_select %p661, %s660, 0
        %p663 = scmp.lt.s32.totalorder %s662, 11
        %s664 = scalar_select %p663, %s662, 11
        %s665 = scalar_lea.vmem %s2, %s659
        %s666 = scalar_lea.vmem [#allocation2], 7
        %s667 = scalar_lea.sflag [#allocation4], 7
        // Predicated region
        $region433: #{tpu_custom_call.1} parent=11 // pred_check
          _
        $region434: #{tpu_custom_call.1} parent=11 // pred_check_branch
          %669 = sbr.rel target = $region436
        $region435: #{tpu_custom_call.1} parent=11 // pred_region
          // Predicated region
          $region448: #{tpu_custom_call.1} parent=435 // pred_check
            _
          $region449: #{tpu_custom_call.1} parent=435 // pred_check_branch
            %685 = sbr.rel (0) target = $region451
          $region450: #{tpu_custom_call.1} parent=435 // pred_region
            %s687 = ssub.s32 2, 1
            loop: start=0, step=1, limit=1
            $region452: #{tpu_custom_call.1} parent=450 // loop_pre_header
              _
            $region453: #{tpu_custom_call.1} parent=450 // loop_header
              %s689 = sphi 0, %s693
              %p690 = scmp.ge.s32.totalorder %s689, 1
              %s694 = sphi %s665, %s665
              %s695 = sphi %s666, %s666
            $region454: #{tpu_custom_call.1} parent=450 // loop_header_branch
              %692 = sbr.rel (%p690) target = $region458
            $region455: #{tpu_custom_call.1} parent=450 // loop_body
              %v696 = vld [vmem:[%s694] sm:%s687]
              %697 = vst [vmem:[%s695] sm:%s687] %v696
            $region456: #{tpu_custom_call.1} parent=450 // loop_footer
              %s693 = sadd.s32 1, %s689
            $region457: #{tpu_custom_call.1} parent=450 // loop_footer_branch
              %688 = sbr.rel target = $region453
            $region458: #{tpu_custom_call.1} parent=450 // loop_exit
              _
          $region451: #{tpu_custom_call.1} parent=435 // pred_fallthru
            _
        $region436: #{tpu_custom_call.1} parent=11 // pred_fallthru
          _
        // Predicated region
        $region437: #{tpu_custom_call.1} parent=11 // pred_check
          _
        $region438: #{tpu_custom_call.1} parent=11 // pred_check_branch
          %671 = sbr.rel (0) target = $region440
        $region439: #{tpu_custom_call.1} parent=11 // pred_region
          %s673 = ssub.s32 2, 1
          loop: start=0, step=1, limit=1
          $region441: #{tpu_custom_call.1} parent=439 // loop_pre_header
            _
          $region442: #{tpu_custom_call.1} parent=439 // loop_header
            %s675 = sphi 0, %s679
            %p676 = scmp.ge.s32.totalorder %s675, 1
            %s680 = sphi %s665, %s665
            %s681 = sphi %s666, %s666
          $region443: #{tpu_custom_call.1} parent=439 // loop_header_branch
            %678 = sbr.rel (%p676) target = $region447
          $region444: #{tpu_custom_call.1} parent=439 // loop_body
            %v682 = vld [vmem:[%s680] sm:%s673]
            %683 = vst [vmem:[%s681] sm:%s673] %v682
          $region445: #{tpu_custom_call.1} parent=439 // loop_footer
            %s679 = sadd.s32 1, %s675
          $region446: #{tpu_custom_call.1} parent=439 // loop_footer_branch
            %674 = sbr.rel target = $region442
          $region447: #{tpu_custom_call.1} parent=439 // loop_exit
            _
        $region440: #{tpu_custom_call.1} parent=11 // pred_fallthru
          _
        // Predicated region
        $region459: #{tpu_custom_call.1} parent=11 // pred_check
          _
        $region460: #{tpu_custom_call.1} parent=11 // pred_check_branch
          %700 = sbr.rel (0) target = $region462
        $region461: #{tpu_custom_call.1} parent=11 // pred_region
          %701 = vsyncadd %s667, 16
        $region462: #{tpu_custom_call.1} parent=11 // pred_fallthru
          _
        %s702 = scalar_lea.vmem %s3, %s664
        %s703 = scalar_lea.vmem [#allocation3], 7
        %s704 = scalar_lea.sflag [#allocation4], 15
        // Predicated region
        $region463: #{tpu_custom_call.1} parent=11 // pred_check
          _
        $region464: #{tpu_custom_call.1} parent=11 // pred_check_branch
          %706 = sbr.rel target = $region466
        $region465: #{tpu_custom_call.1} parent=11 // pred_region
          // Predicated region
          $region478: #{tpu_custom_call.1} parent=465 // pred_check
            _
          $region479: #{tpu_custom_call.1} parent=465 // pred_check_branch
            %722 = sbr.rel (0) target = $region481
          $region480: #{tpu_custom_call.1} parent=465 // pred_region
            %s724 = ssub.s32 2, 1
            loop: start=0, step=1, limit=1
            $region482: #{tpu_custom_call.1} parent=480 // loop_pre_header
              _
            $region483: #{tpu_custom_call.1} parent=480 // loop_header
              %s726 = sphi 0, %s730
              %p727 = scmp.ge.s32.totalorder %s726, 1
              %s731 = sphi %s702, %s702
              %s732 = sphi %s703, %s703
            $region484: #{tpu_custom_call.1} parent=480 // loop_header_branch
              %729 = sbr.rel (%p727) target = $region488
            $region485: #{tpu_custom_call.1} parent=480 // loop_body
              %v733 = vld [vmem:[%s731] sm:%s724]
              %734 = vst [vmem:[%s732] sm:%s724] %v733
            $region486: #{tpu_custom_call.1} parent=480 // loop_footer
              %s730 = sadd.s32 1, %s726
            $region487: #{tpu_custom_call.1} parent=480 // loop_footer_branch
              %725 = sbr.rel target = $region483
            $region488: #{tpu_custom_call.1} parent=480 // loop_exit
              _
          $region481: #{tpu_custom_call.1} parent=465 // pred_fallthru
            _
        $region466: #{tpu_custom_call.1} parent=11 // pred_fallthru
          _
        // Predicated region
        $region467: #{tpu_custom_call.1} parent=11 // pred_check
          _
        $region468: #{tpu_custom_call.1} parent=11 // pred_check_branch
          %708 = sbr.rel (0) target = $region470
        $region469: #{tpu_custom_call.1} parent=11 // pred_region
          %s710 = ssub.s32 2, 1
          loop: start=0, step=1, limit=1
          $region471: #{tpu_custom_call.1} parent=469 // loop_pre_header
            _
          $region472: #{tpu_custom_call.1} parent=469 // loop_header
            %s712 = sphi 0, %s716
            %p713 = scmp.ge.s32.totalorder %s712, 1
            %s717 = sphi %s702, %s702
            %s718 = sphi %s703, %s703
          $region473: #{tpu_custom_call.1} parent=469 // loop_header_branch
            %715 = sbr.rel (%p713) target = $region477
          $region474: #{tpu_custom_call.1} parent=469 // loop_body
            %v719 = vld [vmem:[%s717] sm:%s710]
            %720 = vst [vmem:[%s718] sm:%s710] %v719
          $region475: #{tpu_custom_call.1} parent=469 // loop_footer
            %s716 = sadd.s32 1, %s712
          $region476: #{tpu_custom_call.1} parent=469 // loop_footer_branch
            %711 = sbr.rel target = $region472
          $region477: #{tpu_custom_call.1} parent=469 // loop_exit
            _
        $region470: #{tpu_custom_call.1} parent=11 // pred_fallthru
          _
        // Predicated region
        $region489: #{tpu_custom_call.1} parent=11 // pred_check
          _
        $region490: #{tpu_custom_call.1} parent=11 // pred_check_branch
          %737 = sbr.rel (0) target = $region492
        $region491: #{tpu_custom_call.1} parent=11 // pred_region
          %738 = vsyncadd %s704, 16
        $region492: #{tpu_custom_call.1} parent=11 // pred_fallthru
          _
        %s739 = smul.u32 1, 1
        %s740 = sshll.u32 %s739, 4
        %741 = dma.done [#allocation4], %s740
        %s742 = sshll.u32 %s739, 4
        %743 = dma.done %s109, %s742
        %s744 = sshll.u32 %s739, 4
        %745 = dma.done %s157, %s744
        %s746 = sshll.u32 %s739, 4
        %747 = dma.done %s194, %s746
        %s748 = sshll.u32 %s739, 4
        %749 = dma.done %s242, %s748
        %s750 = sshll.u32 %s739, 4
        %751 = dma.done %s279, %s750
        %s752 = sshll.u32 %s739, 4
        %753 = dma.done %s327, %s752
        %s754 = sshll.u32 %s739, 4
        %755 = dma.done %s364, %s754
        %s756 = sshll.u32 %s739, 4
        %757 = dma.done %s412, %s756
        %s758 = sshll.u32 %s739, 4
        %759 = dma.done %s449, %s758
        %s760 = sshll.u32 %s739, 4
        %761 = dma.done %s497, %s760
        %s762 = sshll.u32 %s739, 4
        %763 = dma.done %s534, %s762
        %s764 = sshll.u32 %s739, 4
        %765 = dma.done %s582, %s764
        %s766 = sshll.u32 %s739, 4
        %767 = dma.done %s619, %s766
        %s768 = sshll.u32 %s739, 4
        %769 = dma.done %s667, %s768
        %s770 = sshll.u32 %s739, 4
        %771 = dma.done %s704, %s770
        %v772 = vld [vmem:[#allocation2] sm:$0xff]
        %v773 = vld [vmem:[#allocation3] sm:$0xff]
        %v774 = vmul.f32 %v772, %v773
        %vm775 = vcmask 39936
        %v776 = vsel %vm775, %v774, 0.0
        %777 = vadd.xlane.f32.xlu0 %v776
        %v778 = vpop.xlane.xlu0 %777
        %v779 = vrot.slane %v778, 4
        %v780 = vadd.f32 %v778, %v779
        %v781 = vrot.slane %v780, 2
        %v782 = vadd.f32 %v780, %v781
        %v783 = vrot.slane %v782, 1
        %v784 = vadd.f32 %v782, %v783
        %785 = vst [vmem:[%s61] sm:$0x1] %v784
        %s786 = sand.u32 %s35, 1
        %s787 = scalar_lea.sflag [#allocation9], %s786
        %s788 = sand.u32 %s35, 1
        %s789 = scalar_lea.vmem [#allocation8], %s788
        // Predicated region
        $region493: #{tpu_custom_call.1} parent=11 // pred_check
          %p790 = pneg %p41
        $region494: #{tpu_custom_call.1} parent=11 // pred_check_branch
          %792 = sbr.rel (%p790) target = $region496
        $region495: #{tpu_custom_call.1} parent=11 // pred_region
          %794 = vsyncadd %s787, 0
          %s795 = scalar_lea.hbm %s4, %s26
          %s797 = sshll.u32 %s789, 4
          %s798 = int_to_ptr.vmem [resolvable:$true] %s797
          %s799 = sshll.u32 %s795, 4
          %s800 = int_to_ptr.hbm [resolvable:$true] %s799
          %802 = dma.vmem_to_hbm [thread:$0]  %s798, 16, %s800, %s787
        $region496: #{tpu_custom_call.1} parent=11 // pred_fallthru
          _
      $region12: #{tpu_custom_call.1} parent=5 // pred_fallthru
        _
      %p803 = scmp.le.s32.totalorder 1, %s26
      // Predicated region
      $region497: #{tpu_custom_call.1} parent=5 // pred_check
        %p804 = pneg %p803
      $region498: #{tpu_custom_call.1} parent=5 // pred_check_branch
        %806 = sbr.rel (%p804) target = $region500
      $region499: #{tpu_custom_call.1} parent=5 // pred_region
        %s807 = ssub.s32 %s26, 1
        // Predicated region
        $region501: #{tpu_custom_call.1} parent=499 // pred_check
          %p808 = pneg %p47
        $region502: #{tpu_custom_call.1} parent=499 // pred_check_branch
          %810 = sbr.rel (%p808) target = $region504
        $region503: #{tpu_custom_call.1} parent=499 // pred_region
          %s811 = sand.u32 %s38, 1
          %s812 = scalar_lea.sflag [#allocation9], %s811
          %s813 = sand.u32 %s38, 1
          %s814 = scalar_lea.vmem [#allocation8], %s813
          %816 = dma.done %s812, 16
        $region504: #{tpu_custom_call.1} parent=499 // pred_fallthru
          _
      $region500: #{tpu_custom_call.1} parent=5 // pred_fallthru
        _
    $region6: #{tpu_custom_call.1} parent=1 // loop_footer
      %s30 = sadd.s32 1, %s26
    $region7: #{tpu_custom_call.1} parent=1 // loop_footer_branch
      %25 = sbr.rel target = $region3
    $region8: #{tpu_custom_call.1} parent=1 // loop_exit
      _
    %817 = vsyncpa [#allocation9], 1
    %s818 = scalar_lea.sflag [#allocation9], 1
    %819 = vsyncpa %s818, 1
  %820 = vsyncmov [#allocation4]
  %s821 = vpop.sfrf %820
  %p822 = scmp.eq.s32.totalorder %s821, 0
  %p823 = pneg %p822
  %825 = shalt.err (%p823)
  %s826 = scalar_lea.sflag [#allocation4], 1
  %827 = vsyncmov %s826
  %s828 = vpop.sfrf %827
  %p829 = scmp.eq.s32.totalorder %s828, 0
  %p830 = pneg %p829
  %832 = shalt.err (%p830)
  %s833 = scalar_lea.sflag [#allocation4], 2
  %834 = vsyncmov %s833
  %s835 = vpop.sfrf %834
  %p836 = scmp.eq.s32.totalorder %s835, 0
  %p837 = pneg %p836
  %839 = shalt.err (%p837)
  %s840 = scalar_lea.sflag [#allocation4], 3
  %841 = vsyncmov %s840
  %s842 = vpop.sfrf %841
  %p843 = scmp.eq.s32.totalorder %s842, 0
  %p844 = pneg %p843
  %846 = shalt.err (%p844)
  %s847 = scalar_lea.sflag [#allocation4], 4
  %848 = vsyncmov %s847
  %s849 = vpop.sfrf %848
  %p850 = scmp.eq.s32.totalorder %s849, 0
  %p851 = pneg %p850
  %853 = shalt.err (%p851)
  %s854 = scalar_lea.sflag [#allocation4], 5
  %855 = vsyncmov %s854
  %s856 = vpop.sfrf %855
  %p857 = scmp.eq.s32.totalorder %s856, 0
  %p858 = pneg %p857
  %860 = shalt.err (%p858)
  %s861 = scalar_lea.sflag [#allocation4], 6
  %862 = vsyncmov %s861
  %s863 = vpop.sfrf %862
  %p864 = scmp.eq.s32.totalorder %s863, 0
  %p865 = pneg %p864
  %867 = shalt.err (%p865)
  %s868 = scalar_lea.sflag [#allocation4], 7
  %869 = vsyncmov %s868
  %s870 = vpop.sfrf %869
  %p871 = scmp.eq.s32.totalorder %s870, 0
  %p872 = pneg %p871
  %874 = shalt.err (%p872)
  %s875 = scalar_lea.sflag [#allocation4], 8
  %876 = vsyncmov %s875
  %s877 = vpop.sfrf %876
  %p878 = scmp.eq.s32.totalorder %s877, 0
  %p879 = pneg %p878
  %881 = shalt.err (%p879)
  %s882 = scalar_lea.sflag [#allocation4], 9
  %883 = vsyncmov %s882
  %s884 = vpop.sfrf %883
  %p885 = scmp.eq.s32.totalorder %s884, 0
  %p886 = pneg %p885
  %888 = shalt.err (%p886)
  %s889 = scalar_lea.sflag [#allocation4], 10
  %890 = vsyncmov %s889
  %s891 = vpop.sfrf %890
  %p892 = scmp.eq.s32.totalorder %s891, 0
  %p893 = pneg %p892
  %895 = shalt.err (%p893)
  %s896 = scalar_lea.sflag [#allocation4], 11
  %897 = vsyncmov %s896
  %s898 = vpop.sfrf %897
  %p899 = scmp.eq.s32.totalorder %s898, 0
  %p900 = pneg %p899
  %902 = shalt.err (%p900)
  %s903 = scalar_lea.sflag [#allocation4], 12
  %904 = vsyncmov %s903
  %s905 = vpop.sfrf %904
  %p906 = scmp.eq.s32.totalorder %s905, 0
  %p907 = pneg %p906
  %909 = shalt.err (%p907)
  %s910 = scalar_lea.sflag [#allocation4], 13
  %911 = vsyncmov %s910
  %s912 = vpop.sfrf %911
  %p913 = scmp.eq.s32.totalorder %s912, 0
  %p914 = pneg %p913
  %916 = shalt.err (%p914)
  %s917 = scalar_lea.sflag [#allocation4], 14
  %918 = vsyncmov %s917
  %s919 = vpop.sfrf %918
  %p920 = scmp.eq.s32.totalorder %s919, 0
  %p921 = pneg %p920
  %923 = shalt.err (%p921)
  %s924 = scalar_lea.sflag [#allocation4], 15
  %925 = vsyncmov %s924
  %s926 = vpop.sfrf %925
  %p927 = scmp.eq.s32.totalorder %s926, 0
  %p928 = pneg %p927
  %930 = shalt.err (%p928)

</llo_original>
